<compile_context>
chip_gen: v5e
topology: v5e:2x2
jax: 0.10.0
libtpu: 0.0.40
codegen_flags: <defaults>
</compile_context>

<pallas_src>
import functools
import math

import jax
import jax.numpy as jnp
import numpy as np
from jax.experimental import pallas as pl
from jax.experimental.pallas import tpu as pltpu


# ------------------------------ fused kernel ------------------------------- #

def _dcm_kernel(x_ref, poolw_ref, mask_ref, wg_ref, bg_ref, wr_ref, br_ref,
                wf_ref, bf_ref, out_ref, pad_ref, *,
                fs, H, W, pt, plft, cin, cout, m_neg, fusion):
    """One grid step == one batch element.

    x_ref    : (1, cin, H*W)   input, channel-major, flat spatial (lane-dense)
    poolw_ref: (fs*fs, H*W)    adaptive-avg-pool weights per filter tap
    mask_ref : (fs*fs, H*W)    zero-pad validity mask per filter tap
    wg/bg    : filter_gen_conv weight (cout, cin) / bias (cout, 1)
    wr/br    : input_redu_conv weight (cout, cin) / bias (cout, 1)
    wf/bf    : fusion_conv     weight (cout, cout)/ bias (cout, 1)
    out_ref  : (1, cout, H*W)
    pad_ref  : VMEM scratch (cout, m_neg + H*W + m_pos), zero-margined copy
    """
    HW = H * W
    x = x_ref[0]                                          # (cin, HW)

    def mac(w_ref, a, k):
        # out[o, m] = sum_c w[o, c] * a[c, m]   (unrolled VPU broadcast-MAC)
        acc = w_ref[:, 0:1] * a[0:1, :]
        for c in range(1, k):
            acc = acc + w_ref[:, c:c + 1] * a[c:c + 1, :]
        return acc

    # filter_gen_conv at full resolution (linear part only; adaptive pooling
    # is applied afterwards — exact by linearity of a 1x1 conv).
    g_lin = mac(wg_ref, x, cin)                           # (cout, HW)

    # input_redu_conv: 1x1 conv + bias + ReLU (norm_cfg is None).
    xr = jnp.maximum(mac(wr_ref, x, cin) + br_ref[...], 0.0)   # (cout, HW)

    # Zero-margined flat copy: a tap shifted by s = di*W + dj reads either the
    # zero margins (rows out of range) or is killed by mask_ref (column wrap),
    # reproducing F.pad(constant 0) + grouped conv2d (cross-correlation).
    pad_ref[...] = jnp.zeros(pad_ref.shape, pad_ref.dtype)
    pad_ref[:, m_neg:m_neg + HW] = xr

    # Dynamic depthwise conv (per-(b, c) generated fs x fs filter) + ReLU.
    acc = jnp.zeros((cout, HW), jnp.float32)
    for u in range(fs):
        for v in range(fs):
            t = u * fs + v
            # Generated filter tap, one scalar per channel: (cout, 1),
            # computed once per tap and broadcast along lanes.
            f_t = bg_ref[...] + jnp.sum(g_lin * poolw_ref[t:t + 1, :],
                                        axis=1, keepdims=True)
            s = (u - pt) * W + (v - plft)
            win = pad_ref[:, m_neg + s:m_neg + s + HW]    # shifted image
            acc = acc + f_t * (win * mask_ref[t:t + 1, :])
    out = jnp.maximum(acc, 0.0)                           # DCM.norm is None

    if fusion:
        out = jnp.maximum(mac(wf_ref, out, cout) + bf_ref[...], 0.0)

    out_ref[0] = out.astype(out_ref.dtype)


# ----------------------------- host-side tables ----------------------------- #

def _dcm_tables(H, W, fs, pt, plft):
    """Adaptive-avg-pool weights and pad-validity masks, shape (fs*fs, H*W)."""
    HW = H * W
    ii, jj = np.meshgrid(np.arange(H), np.arange(W), indexing="ij")
    ii = ii.reshape(HW)
    jj = jj.reshape(HW)
    poolw = np.zeros((fs * fs, HW), np.float32)
    mask = np.zeros((fs * fs, HW), np.float32)
    for u in range(fs):
        rs, re = math.floor(u * H / fs), math.ceil((u + 1) * H / fs)
        for v in range(fs):
            cs, ce = math.floor(v * W / fs), math.ceil((v + 1) * W / fs)
            t = u * fs + v
            sel = (ii >= rs) & (ii < re) & (jj >= cs) & (jj < ce)
            poolw[t, sel] = 1.0 / float((re - rs) * (ce - cs))
            di, dj = u - pt, v - plft
            ok = ((ii + di >= 0) & (ii + di < H) &
                  (jj + dj >= 0) & (jj + dj < W))
            mask[t, ok] = 1.0
    return poolw, mask


# --------------------------------- wrapper ---------------------------------- #

def dcm_forward(x, params, *, filter_size, fusion):
    """x: (B, Cin, H, W) float32 NCHW -> (B, C, H, W)."""
    B, cin, H, W = x.shape
    cout = params["Wr"].shape[0]
    fs = filter_size
    HW = H * W

    # Padding exactly as in the PyTorch module.
    pad = (fs - 1) // 2
    if (fs - 1) % 2 == 0:
        pt, plft = pad, pad                    # symmetric
    else:
        pt, plft = pad + 1, pad + 1            # p2d = (pad+1, pad, pad+1, pad)
    m_neg = pt * W + plft                      # largest negative flat shift
    m_pos = (fs - 1 - pt) * W + (fs - 1 - plft)

    poolw, mask = _dcm_tables(H, W, fs, pt, plft)

    x2 = x.reshape(B, cin, HW)                 # contiguous reshape, no transpose
    bg = params["bg"].reshape(cout, 1)
    br = params["br"].reshape(cout, 1)
    bf = params["bf"].reshape(cout, 1)

    kernel = functools.partial(
        _dcm_kernel, fs=fs, H=H, W=W, pt=pt, plft=plft,
        cin=cin, cout=cout, m_neg=m_neg, fusion=fusion)

    def full(shape):
        return pl.BlockSpec(shape, lambda b: (0,) * len(shape))

    out2 = pl.pallas_call(
        kernel,
        out_shape=jax.ShapeDtypeStruct((B, cout, HW), jnp.float32),
        grid=(B,),
        in_specs=[
            pl.BlockSpec((1, cin, HW), lambda b: (b, 0, 0)),   # x
            full((fs * fs, HW)),                               # pool weights
            full((fs * fs, HW)),                               # pad masks
            full((cout, cin)), full((cout, 1)),                # Wg, bg
            full((cout, cin)), full((cout, 1)),                # Wr, br
            full((cout, cout)), full((cout, 1)),               # Wf, bf
        ],
        out_specs=pl.BlockSpec((1, cout, HW), lambda b: (b, 0, 0)),
        scratch_shapes=[pltpu.VMEM((cout, m_neg + HW + m_pos), jnp.float32)],
        compiler_params=pltpu.CompilerParams(
            dimension_semantics=("parallel",)),   # B=2 -> both v7x TCs busy
    )(x2, jnp.asarray(poolw), jnp.asarray(mask),
      params["Wg"], bg, params["Wr"], br, params["Wf"], bf)

    return out2.reshape(B, cout, H, W)


# --------------------------- pure-JAX reference ----------------------------- #

def adaptive_avg_pool2d(x, k):
    """PyTorch F.adaptive_avg_pool2d semantics (floor/ceil bins)."""
    B, C, H, W = x.shape

    def bins(n):
        return [(math.floor(i * n / k), math.ceil((i + 1) * n / k))
                for i in range(k)]

    rows, cols = bins(H), bins(W)
    return jnp.stack(
        [jnp.stack([x[:, :, rs:re, cs:ce].mean(axis=(2, 3)) for cs, ce in cols],
                   axis=-1)
         for rs, re in rows],
        axis=-2)                                     # (B, C, k, k)


def dcm_reference(x, params, *, filter_size, fusion):
    B, Cin, H, W = x.shape
    fs = filter_size
    hi = jax.lax.Precision.HIGHEST   # reference only: keep it f32-accurate
    pooled = adaptive_avg_pool2d(x, fs)
    gf = jnp.einsum("bcij,oc->boij", pooled, params["Wg"], precision=hi) \
        + params["bg"][None, :, None, None]
    xr = jax.nn.relu(jnp.einsum("bchw,oc->bohw", x, params["Wr"], precision=hi)
                     + params["br"][None, :, None, None])
    pad = (fs - 1) // 2
    if (fs - 1) % 2 == 0:
        pt, pb, plft, prgt = pad, pad, pad, pad
    else:
        pt, pb, plft, prgt = pad + 1, pad, pad + 1, pad
    x_pad = jnp.pad(xr, ((0, 0), (0, 0), (pt, pb), (plft, prgt)))
    C = xr.shape[1]
    out = jnp.zeros((B, C, H, W), jnp.float32)
    for u in range(fs):
        for v in range(fs):
            out = out + x_pad[:, :, u:u + H, v:v + W] \
                * gf[:, :, u, v][:, :, None, None]
    out = jax.nn.relu(out)
    if fusion:
        out = jax.nn.relu(
            jnp.einsum("bchw,oc->bohw", out, params["Wf"], precision=hi)
            + params["bf"][None, :, None, None])
    return out


# ---------------------------------- main ------------------------------------ #

if __name__ == "__main__":
    B, in_channels, channels = 2, 8, 16
    H = W = 16
    filter_size = 3
    fusion = True

    key = jax.random.PRNGKey(0)
    kx, k1, k2, k3, k4, k5, k6 = jax.random.split(key, 7)

    x = jax.random.normal(kx, (B, in_channels, H, W), jnp.float32)

    params = {
        # filter_gen_conv: Conv2d(in_channels, channels, 1) weight/bias
        "Wg": 0.1 * jax.random.normal(k1, (channels, in_channels), jnp.float32),
        "bg": 0.1 * jax.random.normal(k2, (channels,), jnp.float32),
        # input_redu_conv: ConvModule(in_channels, channels, 1) (+ReLU)
        "Wr": 0.1 * jax.random.normal(k3, (channels, in_channels), jnp.float32),
        "br": 0.1 * jax.random.normal(k4, (channels,), jnp.float32),
        # fusion_conv: ConvModule(channels, channels, 1) (+ReLU)
        "Wf": 0.1 * jax.random.normal(k5, (channels, channels), jnp.float32),
        "bf": 0.1 * jax.random.normal(k6, (channels,), jnp.float32),
    }

    fwd = jax.jit(functools.partial(dcm_forward, filter_size=filter_size,
                                    fusion=fusion))
    out = jax.block_until_ready(fwd(x, params))

    ref = jax.block_until_ready(
        dcm_reference(x, params, filter_size=filter_size, fusion=fusion))

    assert out.shape == (B, channels, H, W)
    np.testing.assert_allclose(np.asarray(out), np.asarray(ref),
                               rtol=2e-4, atol=1e-5)

    print("KERNEL_OK")
</pallas_src>

<mosaic_0001>
module attributes {stable_mosaic.version = 11 : i64} {
  func.func @_dcm_kernel(%arg0: i32, %arg1: memref<1x8x256xf32, #tpu.memory_space<vmem>>, %arg2: memref<9x256xf32, #tpu.memory_space<vmem>>, %arg3: memref<9x256xf32, #tpu.memory_space<vmem>>, %arg4: memref<16x8xf32, #tpu.memory_space<vmem>>, %arg5: memref<16x1xf32, #tpu.memory_space<vmem>>, %arg6: memref<16x8xf32, #tpu.memory_space<vmem>>, %arg7: memref<16x1xf32, #tpu.memory_space<vmem>>, %arg8: memref<16x16xf32, #tpu.memory_space<vmem>>, %arg9: memref<16x1xf32, #tpu.memory_space<vmem>>, %arg10: memref<1x16x256xf32, #tpu.memory_space<vmem>>, %arg11: memref<16x290xf32, #tpu.memory_space<vmem>>) attributes {dimension_semantics = [#tpu.dimension_semantics<parallel>], iteration_bounds = array<i64: 2>, scalar_prefetch = 0 : i64, scratch_operands = 1 : i64, tpu.core_type = #tpu.core_type<tc>, window_params = [{transform_indices = @transform_0, window_bounds = array<i64: 1, 8, 256>}, {pipeline_mode = #tpu.pipeline_mode<synchronous>, transform_indices = @transform_1, window_bounds = array<i64: 9, 256>}, {pipeline_mode = #tpu.pipeline_mode<synchronous>, transform_indices = @transform_2, window_bounds = array<i64: 9, 256>}, {pipeline_mode = #tpu.pipeline_mode<synchronous>, transform_indices = @transform_3, window_bounds = array<i64: 16, 8>}, {pipeline_mode = #tpu.pipeline_mode<synchronous>, transform_indices = @transform_4, window_bounds = array<i64: 16, 1>}, {pipeline_mode = #tpu.pipeline_mode<synchronous>, transform_indices = @transform_5, window_bounds = array<i64: 16, 8>}, {pipeline_mode = #tpu.pipeline_mode<synchronous>, transform_indices = @transform_6, window_bounds = array<i64: 16, 1>}, {pipeline_mode = #tpu.pipeline_mode<synchronous>, transform_indices = @transform_7, window_bounds = array<i64: 16, 16>}, {pipeline_mode = #tpu.pipeline_mode<synchronous>, transform_indices = @transform_8, window_bounds = array<i64: 16, 1>}, {transform_indices = @transform_9, window_bounds = array<i64: 1, 16, 256>}]} {
    %c0 = arith.constant 0 : index
    %c0_0 = arith.constant 0 : index
    %c0_1 = arith.constant 0 : index
    %0 = vector.load %arg1[%c0, %c0_0, %c0_1] : memref<1x8x256xf32, #tpu.memory_space<vmem>>, vector<1x8x256xf32>
    %1 = vector.shape_cast %0 : vector<1x8x256xf32> to vector<8x256xf32>
    %c0_2 = arith.constant 0 : index
    %c0_3 = arith.constant 0 : index
    %2 = vector.load %arg4[%c0_2, %c0_3] : memref<16x8xf32, #tpu.memory_space<vmem>>, vector<16x1xf32>
    %3 = vector.extract_strided_slice %1 {offsets = [0, 0], sizes = [1, 256], strides = [1, 1]} : vector<8x256xf32> to vector<1x256xf32>
    %4 = vector.broadcast %2 : vector<16x1xf32> to vector<16x256xf32>
    %5 = vector.broadcast %3 : vector<1x256xf32> to vector<16x256xf32>
    %6 = arith.mulf %4, %5 : vector<16x256xf32>
    %c0_4 = arith.constant 0 : index
    %c1 = arith.constant 1 : index
    %7 = vector.load %arg4[%c0_4, %c1] : memref<16x8xf32, #tpu.memory_space<vmem>>, vector<16x1xf32>
    %8 = vector.extract_strided_slice %1 {offsets = [1, 0], sizes = [1, 256], strides = [1, 1]} : vector<8x256xf32> to vector<1x256xf32>
    %9 = vector.broadcast %7 : vector<16x1xf32> to vector<16x256xf32>
    %10 = vector.broadcast %8 : vector<1x256xf32> to vector<16x256xf32>
    %11 = arith.mulf %9, %10 : vector<16x256xf32>
    %12 = arith.addf %6, %11 : vector<16x256xf32>
    %c0_5 = arith.constant 0 : index
    %c2 = arith.constant 2 : index
    %13 = vector.load %arg4[%c0_5, %c2] : memref<16x8xf32, #tpu.memory_space<vmem>>, vector<16x1xf32>
    %14 = vector.extract_strided_slice %1 {offsets = [2, 0], sizes = [1, 256], strides = [1, 1]} : vector<8x256xf32> to vector<1x256xf32>
    %15 = vector.broadcast %13 : vector<16x1xf32> to vector<16x256xf32>
    %16 = vector.broadcast %14 : vector<1x256xf32> to vector<16x256xf32>
    %17 = arith.mulf %15, %16 : vector<16x256xf32>
    %18 = arith.addf %12, %17 : vector<16x256xf32>
    %c0_6 = arith.constant 0 : index
    %c3 = arith.constant 3 : index
    %19 = vector.load %arg4[%c0_6, %c3] : memref<16x8xf32, #tpu.memory_space<vmem>>, vector<16x1xf32>
    %20 = vector.extract_strided_slice %1 {offsets = [3, 0], sizes = [1, 256], strides = [1, 1]} : vector<8x256xf32> to vector<1x256xf32>
    %21 = vector.broadcast %19 : vector<16x1xf32> to vector<16x256xf32>
    %22 = vector.broadcast %20 : vector<1x256xf32> to vector<16x256xf32>
    %23 = arith.mulf %21, %22 : vector<16x256xf32>
    %24 = arith.addf %18, %23 : vector<16x256xf32>
    %c0_7 = arith.constant 0 : index
    %c4 = arith.constant 4 : index
    %25 = vector.load %arg4[%c0_7, %c4] : memref<16x8xf32, #tpu.memory_space<vmem>>, vector<16x1xf32>
    %26 = vector.extract_strided_slice %1 {offsets = [4, 0], sizes = [1, 256], strides = [1, 1]} : vector<8x256xf32> to vector<1x256xf32>
    %27 = vector.broadcast %25 : vector<16x1xf32> to vector<16x256xf32>
    %28 = vector.broadcast %26 : vector<1x256xf32> to vector<16x256xf32>
    %29 = arith.mulf %27, %28 : vector<16x256xf32>
    %30 = arith.addf %24, %29 : vector<16x256xf32>
    %c0_8 = arith.constant 0 : index
    %c5 = arith.constant 5 : index
    %31 = vector.load %arg4[%c0_8, %c5] : memref<16x8xf32, #tpu.memory_space<vmem>>, vector<16x1xf32>
    %32 = vector.extract_strided_slice %1 {offsets = [5, 0], sizes = [1, 256], strides = [1, 1]} : vector<8x256xf32> to vector<1x256xf32>
    %33 = vector.broadcast %31 : vector<16x1xf32> to vector<16x256xf32>
    %34 = vector.broadcast %32 : vector<1x256xf32> to vector<16x256xf32>
    %35 = arith.mulf %33, %34 : vector<16x256xf32>
    %36 = arith.addf %30, %35 : vector<16x256xf32>
    %c0_9 = arith.constant 0 : index
    %c6 = arith.constant 6 : index
    %37 = vector.load %arg4[%c0_9, %c6] : memref<16x8xf32, #tpu.memory_space<vmem>>, vector<16x1xf32>
    %38 = vector.extract_strided_slice %1 {offsets = [6, 0], sizes = [1, 256], strides = [1, 1]} : vector<8x256xf32> to vector<1x256xf32>
    %39 = vector.broadcast %37 : vector<16x1xf32> to vector<16x256xf32>
    %40 = vector.broadcast %38 : vector<1x256xf32> to vector<16x256xf32>
    %41 = arith.mulf %39, %40 : vector<16x256xf32>
    %42 = arith.addf %36, %41 : vector<16x256xf32>
    %c0_10 = arith.constant 0 : index
    %c7 = arith.constant 7 : index
    %43 = vector.load %arg4[%c0_10, %c7] : memref<16x8xf32, #tpu.memory_space<vmem>>, vector<16x1xf32>
    %44 = vector.extract_strided_slice %1 {offsets = [7, 0], sizes = [1, 256], strides = [1, 1]} : vector<8x256xf32> to vector<1x256xf32>
    %45 = vector.broadcast %43 : vector<16x1xf32> to vector<16x256xf32>
    %46 = vector.broadcast %44 : vector<1x256xf32> to vector<16x256xf32>
    %47 = arith.mulf %45, %46 : vector<16x256xf32>
    %48 = arith.addf %42, %47 : vector<16x256xf32>
    %c0_11 = arith.constant 0 : index
    %c0_12 = arith.constant 0 : index
    %49 = vector.load %arg6[%c0_11, %c0_12] : memref<16x8xf32, #tpu.memory_space<vmem>>, vector<16x1xf32>
    %50 = vector.extract_strided_slice %1 {offsets = [0, 0], sizes = [1, 256], strides = [1, 1]} : vector<8x256xf32> to vector<1x256xf32>
    %51 = vector.broadcast %49 : vector<16x1xf32> to vector<16x256xf32>
    %52 = vector.broadcast %50 : vector<1x256xf32> to vector<16x256xf32>
    %53 = arith.mulf %51, %52 : vector<16x256xf32>
    %c0_13 = arith.constant 0 : index
    %c1_14 = arith.constant 1 : index
    %54 = vector.load %arg6[%c0_13, %c1_14] : memref<16x8xf32, #tpu.memory_space<vmem>>, vector<16x1xf32>
    %55 = vector.extract_strided_slice %1 {offsets = [1, 0], sizes = [1, 256], strides = [1, 1]} : vector<8x256xf32> to vector<1x256xf32>
    %56 = vector.broadcast %54 : vector<16x1xf32> to vector<16x256xf32>
    %57 = vector.broadcast %55 : vector<1x256xf32> to vector<16x256xf32>
    %58 = arith.mulf %56, %57 : vector<16x256xf32>
    %59 = arith.addf %53, %58 : vector<16x256xf32>
    %c0_15 = arith.constant 0 : index
    %c2_16 = arith.constant 2 : index
    %60 = vector.load %arg6[%c0_15, %c2_16] : memref<16x8xf32, #tpu.memory_space<vmem>>, vector<16x1xf32>
    %61 = vector.extract_strided_slice %1 {offsets = [2, 0], sizes = [1, 256], strides = [1, 1]} : vector<8x256xf32> to vector<1x256xf32>
    %62 = vector.broadcast %60 : vector<16x1xf32> to vector<16x256xf32>
    %63 = vector.broadcast %61 : vector<1x256xf32> to vector<16x256xf32>
    %64 = arith.mulf %62, %63 : vector<16x256xf32>
    %65 = arith.addf %59, %64 : vector<16x256xf32>
    %c0_17 = arith.constant 0 : index
    %c3_18 = arith.constant 3 : index
    %66 = vector.load %arg6[%c0_17, %c3_18] : memref<16x8xf32, #tpu.memory_space<vmem>>, vector<16x1xf32>
    %67 = vector.extract_strided_slice %1 {offsets = [3, 0], sizes = [1, 256], strides = [1, 1]} : vector<8x256xf32> to vector<1x256xf32>
    %68 = vector.broadcast %66 : vector<16x1xf32> to vector<16x256xf32>
    %69 = vector.broadcast %67 : vector<1x256xf32> to vector<16x256xf32>
    %70 = arith.mulf %68, %69 : vector<16x256xf32>
    %71 = arith.addf %65, %70 : vector<16x256xf32>
    %c0_19 = arith.constant 0 : index
    %c4_20 = arith.constant 4 : index
    %72 = vector.load %arg6[%c0_19, %c4_20] : memref<16x8xf32, #tpu.memory_space<vmem>>, vector<16x1xf32>
    %73 = vector.extract_strided_slice %1 {offsets = [4, 0], sizes = [1, 256], strides = [1, 1]} : vector<8x256xf32> to vector<1x256xf32>
    %74 = vector.broadcast %72 : vector<16x1xf32> to vector<16x256xf32>
    %75 = vector.broadcast %73 : vector<1x256xf32> to vector<16x256xf32>
    %76 = arith.mulf %74, %75 : vector<16x256xf32>
    %77 = arith.addf %71, %76 : vector<16x256xf32>
    %c0_21 = arith.constant 0 : index
    %c5_22 = arith.constant 5 : index
    %78 = vector.load %arg6[%c0_21, %c5_22] : memref<16x8xf32, #tpu.memory_space<vmem>>, vector<16x1xf32>
    %79 = vector.extract_strided_slice %1 {offsets = [5, 0], sizes = [1, 256], strides = [1, 1]} : vector<8x256xf32> to vector<1x256xf32>
    %80 = vector.broadcast %78 : vector<16x1xf32> to vector<16x256xf32>
    %81 = vector.broadcast %79 : vector<1x256xf32> to vector<16x256xf32>
    %82 = arith.mulf %80, %81 : vector<16x256xf32>
    %83 = arith.addf %77, %82 : vector<16x256xf32>
    %c0_23 = arith.constant 0 : index
    %c6_24 = arith.constant 6 : index
    %84 = vector.load %arg6[%c0_23, %c6_24] : memref<16x8xf32, #tpu.memory_space<vmem>>, vector<16x1xf32>
    %85 = vector.extract_strided_slice %1 {offsets = [6, 0], sizes = [1, 256], strides = [1, 1]} : vector<8x256xf32> to vector<1x256xf32>
    %86 = vector.broadcast %84 : vector<16x1xf32> to vector<16x256xf32>
    %87 = vector.broadcast %85 : vector<1x256xf32> to vector<16x256xf32>
    %88 = arith.mulf %86, %87 : vector<16x256xf32>
    %89 = arith.addf %83, %88 : vector<16x256xf32>
    %c0_25 = arith.constant 0 : index
    %c7_26 = arith.constant 7 : index
    %90 = vector.load %arg6[%c0_25, %c7_26] : memref<16x8xf32, #tpu.memory_space<vmem>>, vector<16x1xf32>
    %91 = vector.extract_strided_slice %1 {offsets = [7, 0], sizes = [1, 256], strides = [1, 1]} : vector<8x256xf32> to vector<1x256xf32>
    %92 = vector.broadcast %90 : vector<16x1xf32> to vector<16x256xf32>
    %93 = vector.broadcast %91 : vector<1x256xf32> to vector<16x256xf32>
    %94 = arith.mulf %92, %93 : vector<16x256xf32>
    %95 = arith.addf %89, %94 : vector<16x256xf32>
    %c0_27 = arith.constant 0 : index
    %c0_28 = arith.constant 0 : index
    %96 = vector.load %arg7[%c0_27, %c0_28] : memref<16x1xf32, #tpu.memory_space<vmem>>, vector<16x1xf32>
    %97 = vector.broadcast %96 : vector<16x1xf32> to vector<16x256xf32>
    %98 = arith.addf %95, %97 : vector<16x256xf32>
    %cst = arith.constant 0.000000e+00 : f32
    %99 = vector.broadcast %cst : f32 to vector<16x256xf32>
    %100 = arith.maximumf %98, %99 : vector<16x256xf32>
    %cst_29 = arith.constant 0.000000e+00 : f32
    %101 = vector.broadcast %cst_29 : f32 to vector<16x290xf32>
    %c0_30 = arith.constant 0 : index
    %c0_31 = arith.constant 0 : index
    %102 = vector.load %arg11[%c0_30, %c0_31] : memref<16x290xf32, #tpu.memory_space<vmem>>, vector<16x290xf32>
    tpu.vector_store %arg11[%c0_30, %c0_31], %101 {strides = array<i32>} : memref<16x290xf32, #tpu.memory_space<vmem>>, vector<16x290xf32>,
    %c0_32 = arith.constant 0 : index
    %c17 = arith.constant 17 : index
    %103 = vector.load %arg11[%c0_32, %c17] : memref<16x290xf32, #tpu.memory_space<vmem>>, vector<16x256xf32>
    tpu.vector_store %arg11[%c0_32, %c17], %100 {strides = array<i32>} : memref<16x290xf32, #tpu.memory_space<vmem>>, vector<16x256xf32>,
    %cst_33 = arith.constant 0.000000e+00 : f32
    %104 = vector.broadcast %cst_33 : f32 to vector<16x256xf32>
    %c0_34 = arith.constant 0 : index
    %c0_35 = arith.constant 0 : index
    %105 = vector.load %arg5[%c0_34, %c0_35] : memref<16x1xf32, #tpu.memory_space<vmem>>, vector<16x1xf32>
    %c0_36 = arith.constant 0 : index
    %c0_37 = arith.constant 0 : index
    %106 = vector.load %arg2[%c0_36, %c0_37] : memref<9x256xf32, #tpu.memory_space<vmem>>, vector<1x256xf32>
    %107 = vector.broadcast %106 : vector<1x256xf32> to vector<16x256xf32>
    %108 = arith.mulf %48, %107 : vector<16x256xf32>
    %cst_38 = arith.constant dense<0.000000e+00> : vector<16xf32>
    %109 = vector.multi_reduction <add>, %108, %cst_38 [1] : vector<16x256xf32> to vector<16xf32>
    %110 = vector.shape_cast %109 : vector<16xf32> to vector<16x1xf32>
    %111 = arith.addf %105, %110 : vector<16x1xf32>
    %c0_39 = arith.constant 0 : index
    %c0_40 = arith.constant 0 : index
    %112 = vector.load %arg11[%c0_39, %c0_40] : memref<16x290xf32, #tpu.memory_space<vmem>>, vector<16x256xf32>
    %c0_41 = arith.constant 0 : index
    %c0_42 = arith.constant 0 : index
    %113 = vector.load %arg3[%c0_41, %c0_42] : memref<9x256xf32, #tpu.memory_space<vmem>>, vector<1x256xf32>
    %114 = vector.broadcast %113 : vector<1x256xf32> to vector<16x256xf32>
    %115 = arith.mulf %112, %114 : vector<16x256xf32>
    %116 = vector.broadcast %111 : vector<16x1xf32> to vector<16x256xf32>
    %117 = arith.mulf %116, %115 : vector<16x256xf32>
    %118 = arith.addf %104, %117 : vector<16x256xf32>
    %c0_43 = arith.constant 0 : index
    %c0_44 = arith.constant 0 : index
    %119 = vector.load %arg5[%c0_43, %c0_44] : memref<16x1xf32, #tpu.memory_space<vmem>>, vector<16x1xf32>
    %c1_45 = arith.constant 1 : index
    %c0_46 = arith.constant 0 : index
    %120 = vector.load %arg2[%c1_45, %c0_46] : memref<9x256xf32, #tpu.memory_space<vmem>>, vector<1x256xf32>
    %121 = vector.broadcast %120 : vector<1x256xf32> to vector<16x256xf32>
    %122 = arith.mulf %48, %121 : vector<16x256xf32>
    %cst_47 = arith.constant dense<0.000000e+00> : vector<16xf32>
    %123 = vector.multi_reduction <add>, %122, %cst_47 [1] : vector<16x256xf32> to vector<16xf32>
    %124 = vector.shape_cast %123 : vector<16xf32> to vector<16x1xf32>
    %125 = arith.addf %119, %124 : vector<16x1xf32>
    %c0_48 = arith.constant 0 : index
    %c1_49 = arith.constant 1 : index
    %126 = vector.load %arg11[%c0_48, %c1_49] : memref<16x290xf32, #tpu.memory_space<vmem>>, vector<16x256xf32>
    %c1_50 = arith.constant 1 : index
    %c0_51 = arith.constant 0 : index
    %127 = vector.load %arg3[%c1_50, %c0_51] : memref<9x256xf32, #tpu.memory_space<vmem>>, vector<1x256xf32>
    %128 = vector.broadcast %127 : vector<1x256xf32> to vector<16x256xf32>
    %129 = arith.mulf %126, %128 : vector<16x256xf32>
    %130 = vector.broadcast %125 : vector<16x1xf32> to vector<16x256xf32>
    %131 = arith.mulf %130, %129 : vector<16x256xf32>
    %132 = arith.addf %118, %131 : vector<16x256xf32>
    %c0_52 = arith.constant 0 : index
    %c0_53 = arith.constant 0 : index
    %133 = vector.load %arg5[%c0_52, %c0_53] : memref<16x1xf32, #tpu.memory_space<vmem>>, vector<16x1xf32>
    %c2_54 = arith.constant 2 : index
    %c0_55 = arith.constant 0 : index
    %134 = vector.load %arg2[%c2_54, %c0_55] : memref<9x256xf32, #tpu.memory_space<vmem>>, vector<1x256xf32>
    %135 = vector.broadcast %134 : vector<1x256xf32> to vector<16x256xf32>
    %136 = arith.mulf %48, %135 : vector<16x256xf32>
    %cst_56 = arith.constant dense<0.000000e+00> : vector<16xf32>
    %137 = vector.multi_reduction <add>, %136, %cst_56 [1] : vector<16x256xf32> to vector<16xf32>
    %138 = vector.shape_cast %137 : vector<16xf32> to vector<16x1xf32>
    %139 = arith.addf %133, %138 : vector<16x1xf32>
    %c0_57 = arith.constant 0 : index
    %c2_58 = arith.constant 2 : index
    %140 = vector.load %arg11[%c0_57, %c2_58] : memref<16x290xf32, #tpu.memory_space<vmem>>, vector<16x256xf32>
    %c2_59 = arith.constant 2 : index
    %c0_60 = arith.constant 0 : index
    %141 = vector.load %arg3[%c2_59, %c0_60] : memref<9x256xf32, #tpu.memory_space<vmem>>, vector<1x256xf32>
    %142 = vector.broadcast %141 : vector<1x256xf32> to vector<16x256xf32>
    %143 = arith.mulf %140, %142 : vector<16x256xf32>
    %144 = vector.broadcast %139 : vector<16x1xf32> to vector<16x256xf32>
    %145 = arith.mulf %144, %143 : vector<16x256xf32>
    %146 = arith.addf %132, %145 : vector<16x256xf32>
    %c0_61 = arith.constant 0 : index
    %c0_62 = arith.constant 0 : index
    %147 = vector.load %arg5[%c0_61, %c0_62] : memref<16x1xf32, #tpu.memory_space<vmem>>, vector<16x1xf32>
    %c3_63 = arith.constant 3 : index
    %c0_64 = arith.constant 0 : index
    %148 = vector.load %arg2[%c3_63, %c0_64] : memref<9x256xf32, #tpu.memory_space<vmem>>, vector<1x256xf32>
    %149 = vector.broadcast %148 : vector<1x256xf32> to vector<16x256xf32>
    %150 = arith.mulf %48, %149 : vector<16x256xf32>
    %cst_65 = arith.constant dense<0.000000e+00> : vector<16xf32>
    %151 = vector.multi_reduction <add>, %150, %cst_65 [1] : vector<16x256xf32> to vector<16xf32>
    %152 = vector.shape_cast %151 : vector<16xf32> to vector<16x1xf32>
    %153 = arith.addf %147, %152 : vector<16x1xf32>
    %c0_66 = arith.constant 0 : index
    %c16 = arith.constant 16 : index
    %154 = vector.load %arg11[%c0_66, %c16] : memref<16x290xf32, #tpu.memory_space<vmem>>, vector<16x256xf32>
    %c3_67 = arith.constant 3 : index
    %c0_68 = arith.constant 0 : index
    %155 = vector.load %arg3[%c3_67, %c0_68] : memref<9x256xf32, #tpu.memory_space<vmem>>, vector<1x256xf32>
    %156 = vector.broadcast %155 : vector<1x256xf32> to vector<16x256xf32>
    %157 = arith.mulf %154, %156 : vector<16x256xf32>
    %158 = vector.broadcast %153 : vector<16x1xf32> to vector<16x256xf32>
    %159 = arith.mulf %158, %157 : vector<16x256xf32>
    %160 = arith.addf %146, %159 : vector<16x256xf32>
    %c0_69 = arith.constant 0 : index
    %c0_70 = arith.constant 0 : index
    %161 = vector.load %arg5[%c0_69, %c0_70] : memref<16x1xf32, #tpu.memory_space<vmem>>, vector<16x1xf32>
    %c4_71 = arith.constant 4 : index
    %c0_72 = arith.constant 0 : index
    %162 = vector.load %arg2[%c4_71, %c0_72] : memref<9x256xf32, #tpu.memory_space<vmem>>, vector<1x256xf32>
    %163 = vector.broadcast %162 : vector<1x256xf32> to vector<16x256xf32>
    %164 = arith.mulf %48, %163 : vector<16x256xf32>
    %cst_73 = arith.constant dense<0.000000e+00> : vector<16xf32>
    %165 = vector.multi_reduction <add>, %164, %cst_73 [1] : vector<16x256xf32> to vector<16xf32>
    %166 = vector.shape_cast %165 : vector<16xf32> to vector<16x1xf32>
    %167 = arith.addf %161, %166 : vector<16x1xf32>
    %c0_74 = arith.constant 0 : index
    %c17_75 = arith.constant 17 : index
    %168 = vector.load %arg11[%c0_74, %c17_75] : memref<16x290xf32, #tpu.memory_space<vmem>>, vector<16x256xf32>
    %c4_76 = arith.constant 4 : index
    %c0_77 = arith.constant 0 : index
    %169 = vector.load %arg3[%c4_76, %c0_77] : memref<9x256xf32, #tpu.memory_space<vmem>>, vector<1x256xf32>
    %170 = vector.broadcast %169 : vector<1x256xf32> to vector<16x256xf32>
    %171 = arith.mulf %168, %170 : vector<16x256xf32>
    %172 = vector.broadcast %167 : vector<16x1xf32> to vector<16x256xf32>
    %173 = arith.mulf %172, %171 : vector<16x256xf32>
    %174 = arith.addf %160, %173 : vector<16x256xf32>
    %c0_78 = arith.constant 0 : index
    %c0_79 = arith.constant 0 : index
    %175 = vector.load %arg5[%c0_78, %c0_79] : memref<16x1xf32, #tpu.memory_space<vmem>>, vector<16x1xf32>
    %c5_80 = arith.constant 5 : index
    %c0_81 = arith.constant 0 : index
    %176 = vector.load %arg2[%c5_80, %c0_81] : memref<9x256xf32, #tpu.memory_space<vmem>>, vector<1x256xf32>
    %177 = vector.broadcast %176 : vector<1x256xf32> to vector<16x256xf32>
    %178 = arith.mulf %48, %177 : vector<16x256xf32>
    %cst_82 = arith.constant dense<0.000000e+00> : vector<16xf32>
    %179 = vector.multi_reduction <add>, %178, %cst_82 [1] : vector<16x256xf32> to vector<16xf32>
    %180 = vector.shape_cast %179 : vector<16xf32> to vector<16x1xf32>
    %181 = arith.addf %175, %180 : vector<16x1xf32>
    %c0_83 = arith.constant 0 : index
    %c18 = arith.constant 18 : index
    %182 = vector.load %arg11[%c0_83, %c18] : memref<16x290xf32, #tpu.memory_space<vmem>>, vector<16x256xf32>
    %c5_84 = arith.constant 5 : index
    %c0_85 = arith.constant 0 : index
    %183 = vector.load %arg3[%c5_84, %c0_85] : memref<9x256xf32, #tpu.memory_space<vmem>>, vector<1x256xf32>
    %184 = vector.broadcast %183 : vector<1x256xf32> to vector<16x256xf32>
    %185 = arith.mulf %182, %184 : vector<16x256xf32>
    %186 = vector.broadcast %181 : vector<16x1xf32> to vector<16x256xf32>
    %187 = arith.mulf %186, %185 : vector<16x256xf32>
    %188 = arith.addf %174, %187 : vector<16x256xf32>
    %c0_86 = arith.constant 0 : index
    %c0_87 = arith.constant 0 : index
    %189 = vector.load %arg5[%c0_86, %c0_87] : memref<16x1xf32, #tpu.memory_space<vmem>>, vector<16x1xf32>
    %c6_88 = arith.constant 6 : index
    %c0_89 = arith.constant 0 : index
    %190 = vector.load %arg2[%c6_88, %c0_89] : memref<9x256xf32, #tpu.memory_space<vmem>>, vector<1x256xf32>
    %191 = vector.broadcast %190 : vector<1x256xf32> to vector<16x256xf32>
    %192 = arith.mulf %48, %191 : vector<16x256xf32>
    %cst_90 = arith.constant dense<0.000000e+00> : vector<16xf32>
    %193 = vector.multi_reduction <add>, %192, %cst_90 [1] : vector<16x256xf32> to vector<16xf32>
    %194 = vector.shape_cast %193 : vector<16xf32> to vector<16x1xf32>
    %195 = arith.addf %189, %194 : vector<16x1xf32>
    %c0_91 = arith.constant 0 : index
    %c32 = arith.constant 32 : index
    %196 = vector.load %arg11[%c0_91, %c32] : memref<16x290xf32, #tpu.memory_space<vmem>>, vector<16x256xf32>
    %c6_92 = arith.constant 6 : index
    %c0_93 = arith.constant 0 : index
    %197 = vector.load %arg3[%c6_92, %c0_93] : memref<9x256xf32, #tpu.memory_space<vmem>>, vector<1x256xf32>
    %198 = vector.broadcast %197 : vector<1x256xf32> to vector<16x256xf32>
    %199 = arith.mulf %196, %198 : vector<16x256xf32>
    %200 = vector.broadcast %195 : vector<16x1xf32> to vector<16x256xf32>
    %201 = arith.mulf %200, %199 : vector<16x256xf32>
    %202 = arith.addf %188, %201 : vector<16x256xf32>
    %c0_94 = arith.constant 0 : index
    %c0_95 = arith.constant 0 : index
    %203 = vector.load %arg5[%c0_94, %c0_95] : memref<16x1xf32, #tpu.memory_space<vmem>>, vector<16x1xf32>
    %c7_96 = arith.constant 7 : index
    %c0_97 = arith.constant 0 : index
    %204 = vector.load %arg2[%c7_96, %c0_97] : memref<9x256xf32, #tpu.memory_space<vmem>>, vector<1x256xf32>
    %205 = vector.broadcast %204 : vector<1x256xf32> to vector<16x256xf32>
    %206 = arith.mulf %48, %205 : vector<16x256xf32>
    %cst_98 = arith.constant dense<0.000000e+00> : vector<16xf32>
    %207 = vector.multi_reduction <add>, %206, %cst_98 [1] : vector<16x256xf32> to vector<16xf32>
    %208 = vector.shape_cast %207 : vector<16xf32> to vector<16x1xf32>
    %209 = arith.addf %203, %208 : vector<16x1xf32>
    %c0_99 = arith.constant 0 : index
    %c33 = arith.constant 33 : index
    %210 = vector.load %arg11[%c0_99, %c33] : memref<16x290xf32, #tpu.memory_space<vmem>>, vector<16x256xf32>
    %c7_100 = arith.constant 7 : index
    %c0_101 = arith.constant 0 : index
    %211 = vector.load %arg3[%c7_100, %c0_101] : memref<9x256xf32, #tpu.memory_space<vmem>>, vector<1x256xf32>
    %212 = vector.broadcast %211 : vector<1x256xf32> to vector<16x256xf32>
    %213 = arith.mulf %210, %212 : vector<16x256xf32>
    %214 = vector.broadcast %209 : vector<16x1xf32> to vector<16x256xf32>
    %215 = arith.mulf %214, %213 : vector<16x256xf32>
    %216 = arith.addf %202, %215 : vector<16x256xf32>
    %c0_102 = arith.constant 0 : index
    %c0_103 = arith.constant 0 : index
    %217 = vector.load %arg5[%c0_102, %c0_103] : memref<16x1xf32, #tpu.memory_space<vmem>>, vector<16x1xf32>
    %c8 = arith.constant 8 : index
    %c0_104 = arith.constant 0 : index
    %218 = vector.load %arg2[%c8, %c0_104] : memref<9x256xf32, #tpu.memory_space<vmem>>, vector<1x256xf32>
    %219 = vector.broadcast %218 : vector<1x256xf32> to vector<16x256xf32>
    %220 = arith.mulf %48, %219 : vector<16x256xf32>
    %cst_105 = arith.constant dense<0.000000e+00> : vector<16xf32>
    %221 = vector.multi_reduction <add>, %220, %cst_105 [1] : vector<16x256xf32> to vector<16xf32>
    %222 = vector.shape_cast %221 : vector<16xf32> to vector<16x1xf32>
    %223 = arith.addf %217, %222 : vector<16x1xf32>
    %c0_106 = arith.constant 0 : index
    %c34 = arith.constant 34 : index
    %224 = vector.load %arg11[%c0_106, %c34] : memref<16x290xf32, #tpu.memory_space<vmem>>, vector<16x256xf32>
    %c8_107 = arith.constant 8 : index
    %c0_108 = arith.constant 0 : index
    %225 = vector.load %arg3[%c8_107, %c0_108] : memref<9x256xf32, #tpu.memory_space<vmem>>, vector<1x256xf32>
    %226 = vector.broadcast %225 : vector<1x256xf32> to vector<16x256xf32>
    %227 = arith.mulf %224, %226 : vector<16x256xf32>
    %228 = vector.broadcast %223 : vector<16x1xf32> to vector<16x256xf32>
    %229 = arith.mulf %228, %227 : vector<16x256xf32>
    %230 = arith.addf %216, %229 : vector<16x256xf32>
    %cst_109 = arith.constant 0.000000e+00 : f32
    %231 = vector.broadcast %cst_109 : f32 to vector<16x256xf32>
    %232 = arith.maximumf %230, %231 : vector<16x256xf32>
    %c0_110 = arith.constant 0 : index
    %c0_111 = arith.constant 0 : index
    %233 = vector.load %arg8[%c0_110, %c0_111] : memref<16x16xf32, #tpu.memory_space<vmem>>, vector<16x1xf32>
    %234 = vector.extract_strided_slice %232 {offsets = [0, 0], sizes = [1, 256], strides = [1, 1]} : vector<16x256xf32> to vector<1x256xf32>
    %235 = vector.broadcast %233 : vector<16x1xf32> to vector<16x256xf32>
    %236 = vector.broadcast %234 : vector<1x256xf32> to vector<16x256xf32>
    %237 = arith.mulf %235, %236 : vector<16x256xf32>
    %c0_112 = arith.constant 0 : index
    %c1_113 = arith.constant 1 : index
    %238 = vector.load %arg8[%c0_112, %c1_113] : memref<16x16xf32, #tpu.memory_space<vmem>>, vector<16x1xf32>
    %239 = vector.extract_strided_slice %232 {offsets = [1, 0], sizes = [1, 256], strides = [1, 1]} : vector<16x256xf32> to vector<1x256xf32>
    %240 = vector.broadcast %238 : vector<16x1xf32> to vector<16x256xf32>
    %241 = vector.broadcast %239 : vector<1x256xf32> to vector<16x256xf32>
    %242 = arith.mulf %240, %241 : vector<16x256xf32>
    %243 = arith.addf %237, %242 : vector<16x256xf32>
    %c0_114 = arith.constant 0 : index
    %c2_115 = arith.constant 2 : index
    %244 = vector.load %arg8[%c0_114, %c2_115] : memref<16x16xf32, #tpu.memory_space<vmem>>, vector<16x1xf32>
    %245 = vector.extract_strided_slice %232 {offsets = [2, 0], sizes = [1, 256], strides = [1, 1]} : vector<16x256xf32> to vector<1x256xf32>
    %246 = vector.broadcast %244 : vector<16x1xf32> to vector<16x256xf32>
    %247 = vector.broadcast %245 : vector<1x256xf32> to vector<16x256xf32>
    %248 = arith.mulf %246, %247 : vector<16x256xf32>
    %249 = arith.addf %243, %248 : vector<16x256xf32>
    %c0_116 = arith.constant 0 : index
    %c3_117 = arith.constant 3 : index
    %250 = vector.load %arg8[%c0_116, %c3_117] : memref<16x16xf32, #tpu.memory_space<vmem>>, vector<16x1xf32>
    %251 = vector.extract_strided_slice %232 {offsets = [3, 0], sizes = [1, 256], strides = [1, 1]} : vector<16x256xf32> to vector<1x256xf32>
    %252 = vector.broadcast %250 : vector<16x1xf32> to vector<16x256xf32>
    %253 = vector.broadcast %251 : vector<1x256xf32> to vector<16x256xf32>
    %254 = arith.mulf %252, %253 : vector<16x256xf32>
    %255 = arith.addf %249, %254 : vector<16x256xf32>
    %c0_118 = arith.constant 0 : index
    %c4_119 = arith.constant 4 : index
    %256 = vector.load %arg8[%c0_118, %c4_119] : memref<16x16xf32, #tpu.memory_space<vmem>>, vector<16x1xf32>
    %257 = vector.extract_strided_slice %232 {offsets = [4, 0], sizes = [1, 256], strides = [1, 1]} : vector<16x256xf32> to vector<1x256xf32>
    %258 = vector.broadcast %256 : vector<16x1xf32> to vector<16x256xf32>
    %259 = vector.broadcast %257 : vector<1x256xf32> to vector<16x256xf32>
    %260 = arith.mulf %258, %259 : vector<16x256xf32>
    %261 = arith.addf %255, %260 : vector<16x256xf32>
    %c0_120 = arith.constant 0 : index
    %c5_121 = arith.constant 5 : index
    %262 = vector.load %arg8[%c0_120, %c5_121] : memref<16x16xf32, #tpu.memory_space<vmem>>, vector<16x1xf32>
    %263 = vector.extract_strided_slice %232 {offsets = [5, 0], sizes = [1, 256], strides = [1, 1]} : vector<16x256xf32> to vector<1x256xf32>
    %264 = vector.broadcast %262 : vector<16x1xf32> to vector<16x256xf32>
    %265 = vector.broadcast %263 : vector<1x256xf32> to vector<16x256xf32>
    %266 = arith.mulf %264, %265 : vector<16x256xf32>
    %267 = arith.addf %261, %266 : vector<16x256xf32>
    %c0_122 = arith.constant 0 : index
    %c6_123 = arith.constant 6 : index
    %268 = vector.load %arg8[%c0_122, %c6_123] : memref<16x16xf32, #tpu.memory_space<vmem>>, vector<16x1xf32>
    %269 = vector.extract_strided_slice %232 {offsets = [6, 0], sizes = [1, 256], strides = [1, 1]} : vector<16x256xf32> to vector<1x256xf32>
    %270 = vector.broadcast %268 : vector<16x1xf32> to vector<16x256xf32>
    %271 = vector.broadcast %269 : vector<1x256xf32> to vector<16x256xf32>
    %272 = arith.mulf %270, %271 : vector<16x256xf32>
    %273 = arith.addf %267, %272 : vector<16x256xf32>
    %c0_124 = arith.constant 0 : index
    %c7_125 = arith.constant 7 : index
    %274 = vector.load %arg8[%c0_124, %c7_125] : memref<16x16xf32, #tpu.memory_space<vmem>>, vector<16x1xf32>
    %275 = vector.extract_strided_slice %232 {offsets = [7, 0], sizes = [1, 256], strides = [1, 1]} : vector<16x256xf32> to vector<1x256xf32>
    %276 = vector.broadcast %274 : vector<16x1xf32> to vector<16x256xf32>
    %277 = vector.broadcast %275 : vector<1x256xf32> to vector<16x256xf32>
    %278 = arith.mulf %276, %277 : vector<16x256xf32>
    %279 = arith.addf %273, %278 : vector<16x256xf32>
    %c0_126 = arith.constant 0 : index
    %c8_127 = arith.constant 8 : index
    %280 = vector.load %arg8[%c0_126, %c8_127] : memref<16x16xf32, #tpu.memory_space<vmem>>, vector<16x1xf32>
    %281 = vector.extract_strided_slice %232 {offsets = [8, 0], sizes = [1, 256], strides = [1, 1]} : vector<16x256xf32> to vector<1x256xf32>
    %282 = vector.broadcast %280 : vector<16x1xf32> to vector<16x256xf32>
    %283 = vector.broadcast %281 : vector<1x256xf32> to vector<16x256xf32>
    %284 = arith.mulf %282, %283 : vector<16x256xf32>
    %285 = arith.addf %279, %284 : vector<16x256xf32>
    %c0_128 = arith.constant 0 : index
    %c9 = arith.constant 9 : index
    %286 = vector.load %arg8[%c0_128, %c9] : memref<16x16xf32, #tpu.memory_space<vmem>>, vector<16x1xf32>
    %287 = vector.extract_strided_slice %232 {offsets = [9, 0], sizes = [1, 256], strides = [1, 1]} : vector<16x256xf32> to vector<1x256xf32>
    %288 = vector.broadcast %286 : vector<16x1xf32> to vector<16x256xf32>
    %289 = vector.broadcast %287 : vector<1x256xf32> to vector<16x256xf32>
    %290 = arith.mulf %288, %289 : vector<16x256xf32>
    %291 = arith.addf %285, %290 : vector<16x256xf32>
    %c0_129 = arith.constant 0 : index
    %c10 = arith.constant 10 : index
    %292 = vector.load %arg8[%c0_129, %c10] : memref<16x16xf32, #tpu.memory_space<vmem>>, vector<16x1xf32>
    %293 = vector.extract_strided_slice %232 {offsets = [10, 0], sizes = [1, 256], strides = [1, 1]} : vector<16x256xf32> to vector<1x256xf32>
    %294 = vector.broadcast %292 : vector<16x1xf32> to vector<16x256xf32>
    %295 = vector.broadcast %293 : vector<1x256xf32> to vector<16x256xf32>
    %296 = arith.mulf %294, %295 : vector<16x256xf32>
    %297 = arith.addf %291, %296 : vector<16x256xf32>
    %c0_130 = arith.constant 0 : index
    %c11 = arith.constant 11 : index
    %298 = vector.load %arg8[%c0_130, %c11] : memref<16x16xf32, #tpu.memory_space<vmem>>, vector<16x1xf32>
    %299 = vector.extract_strided_slice %232 {offsets = [11, 0], sizes = [1, 256], strides = [1, 1]} : vector<16x256xf32> to vector<1x256xf32>
    %300 = vector.broadcast %298 : vector<16x1xf32> to vector<16x256xf32>
    %301 = vector.broadcast %299 : vector<1x256xf32> to vector<16x256xf32>
    %302 = arith.mulf %300, %301 : vector<16x256xf32>
    %303 = arith.addf %297, %302 : vector<16x256xf32>
    %c0_131 = arith.constant 0 : index
    %c12 = arith.constant 12 : index
    %304 = vector.load %arg8[%c0_131, %c12] : memref<16x16xf32, #tpu.memory_space<vmem>>, vector<16x1xf32>
    %305 = vector.extract_strided_slice %232 {offsets = [12, 0], sizes = [1, 256], strides = [1, 1]} : vector<16x256xf32> to vector<1x256xf32>
    %306 = vector.broadcast %304 : vector<16x1xf32> to vector<16x256xf32>
    %307 = vector.broadcast %305 : vector<1x256xf32> to vector<16x256xf32>
    %308 = arith.mulf %306, %307 : vector<16x256xf32>
    %309 = arith.addf %303, %308 : vector<16x256xf32>
    %c0_132 = arith.constant 0 : index
    %c13 = arith.constant 13 : index
    %310 = vector.load %arg8[%c0_132, %c13] : memref<16x16xf32, #tpu.memory_space<vmem>>, vector<16x1xf32>
    %311 = vector.extract_strided_slice %232 {offsets = [13, 0], sizes = [1, 256], strides = [1, 1]} : vector<16x256xf32> to vector<1x256xf32>
    %312 = vector.broadcast %310 : vector<16x1xf32> to vector<16x256xf32>
    %313 = vector.broadcast %311 : vector<1x256xf32> to vector<16x256xf32>
    %314 = arith.mulf %312, %313 : vector<16x256xf32>
    %315 = arith.addf %309, %314 : vector<16x256xf32>
    %c0_133 = arith.constant 0 : index
    %c14 = arith.constant 14 : index
    %316 = vector.load %arg8[%c0_133, %c14] : memref<16x16xf32, #tpu.memory_space<vmem>>, vector<16x1xf32>
    %317 = vector.extract_strided_slice %232 {offsets = [14, 0], sizes = [1, 256], strides = [1, 1]} : vector<16x256xf32> to vector<1x256xf32>
    %318 = vector.broadcast %316 : vector<16x1xf32> to vector<16x256xf32>
    %319 = vector.broadcast %317 : vector<1x256xf32> to vector<16x256xf32>
    %320 = arith.mulf %318, %319 : vector<16x256xf32>
    %321 = arith.addf %315, %320 : vector<16x256xf32>
    %c0_134 = arith.constant 0 : index
    %c15 = arith.constant 15 : index
    %322 = vector.load %arg8[%c0_134, %c15] : memref<16x16xf32, #tpu.memory_space<vmem>>, vector<16x1xf32>
    %323 = vector.extract_strided_slice %232 {offsets = [15, 0], sizes = [1, 256], strides = [1, 1]} : vector<16x256xf32> to vector<1x256xf32>
    %324 = vector.broadcast %322 : vector<16x1xf32> to vector<16x256xf32>
    %325 = vector.broadcast %323 : vector<1x256xf32> to vector<16x256xf32>
    %326 = arith.mulf %324, %325 : vector<16x256xf32>
    %327 = arith.addf %321, %326 : vector<16x256xf32>
    %c0_135 = arith.constant 0 : index
    %c0_136 = arith.constant 0 : index
    %328 = vector.load %arg9[%c0_135, %c0_136] : memref<16x1xf32, #tpu.memory_space<vmem>>, vector<16x1xf32>
    %329 = vector.broadcast %328 : vector<16x1xf32> to vector<16x256xf32>
    %330 = arith.addf %327, %329 : vector<16x256xf32>
    %cst_137 = arith.constant 0.000000e+00 : f32
    %331 = vector.broadcast %cst_137 : f32 to vector<16x256xf32>
    %332 = arith.maximumf %330, %331 : vector<16x256xf32>
    %c0_138 = arith.constant 0 : index
    %c0_139 = arith.constant 0 : index
    %c0_140 = arith.constant 0 : index
    %333 = vector.load %arg10[%c0_138, %c0_139, %c0_140] : memref<1x16x256xf32, #tpu.memory_space<vmem>>, vector<1x16x256xf32>
    %334 = vector.shape_cast %333 : vector<1x16x256xf32> to vector<16x256xf32>
    %335 = vector.shape_cast %332 : vector<16x256xf32> to vector<1x16x256xf32>
    tpu.vector_store %arg10[%c0_138, %c0_139, %c0_140], %335 {strides = array<i32>} : memref<1x16x256xf32, #tpu.memory_space<vmem>>, vector<1x16x256xf32>,
    return
  }
  func.func @transform_0(%arg0: i32) -> (i32, i32, i32) {
    %c0_i32 = arith.constant 0 : i32
    %c0_i32_0 = arith.constant 0 : i32
    %c0_i32_1 = arith.constant 0 : i32
    return %arg0, %c0_i32, %c0_i32_0 : i32, i32, i32
  }
  func.func @transform_1(%arg0: i32) -> (i32, i32) {
    %c0_i32 = arith.constant 0 : i32
    %c0_i32_0 = arith.constant 0 : i32
    %c0_i32_1 = arith.constant 0 : i32
    return %c0_i32, %c0_i32_0 : i32, i32
  }
  func.func @transform_2(%arg0: i32) -> (i32, i32) {
    %c0_i32 = arith.constant 0 : i32
    %c0_i32_0 = arith.constant 0 : i32
    %c0_i32_1 = arith.constant 0 : i32
    return %c0_i32, %c0_i32_0 : i32, i32
  }
  func.func @transform_3(%arg0: i32) -> (i32, i32) {
    %c0_i32 = arith.constant 0 : i32
    %c0_i32_0 = arith.constant 0 : i32
    %c0_i32_1 = arith.constant 0 : i32
    return %c0_i32, %c0_i32_0 : i32, i32
  }
  func.func @transform_4(%arg0: i32) -> (i32, i32) {
    %c0_i32 = arith.constant 0 : i32
    %c0_i32_0 = arith.constant 0 : i32
    %c0_i32_1 = arith.constant 0 : i32
    return %c0_i32, %c0_i32_0 : i32, i32
  }
  func.func @transform_5(%arg0: i32) -> (i32, i32) {
    %c0_i32 = arith.constant 0 : i32
    %c0_i32_0 = arith.constant 0 : i32
    %c0_i32_1 = arith.constant 0 : i32
    return %c0_i32, %c0_i32_0 : i32, i32
  }
  func.func @transform_6(%arg0: i32) -> (i32, i32) {
    %c0_i32 = arith.constant 0 : i32
    %c0_i32_0 = arith.constant 0 : i32
    %c0_i32_1 = arith.constant 0 : i32
    return %c0_i32, %c0_i32_0 : i32, i32
  }
  func.func @transform_7(%arg0: i32) -> (i32, i32) {
    %c0_i32 = arith.constant 0 : i32
    %c0_i32_0 = arith.constant 0 : i32
    %c0_i32_1 = arith.constant 0 : i32
    return %c0_i32, %c0_i32_0 : i32, i32
  }
  func.func @transform_8(%arg0: i32) -> (i32, i32) {
    %c0_i32 = arith.constant 0 : i32
    %c0_i32_0 = arith.constant 0 : i32
    %c0_i32_1 = arith.constant 0 : i32
    return %c0_i32, %c0_i32_0 : i32, i32
  }
  func.func @transform_9(%arg0: i32) -> (i32, i32, i32) {
    %c0_i32 = arith.constant 0 : i32
    %c0_i32_0 = arith.constant 0 : i32
    %c0_i32_1 = arith.constant 0 : i32
    return %arg0, %c0_i32, %c0_i32_0 : i32, i32, i32
  }
}

</mosaic_0001>

<llo_original>
// kernel: dcm_forward.1
$region0: #{dcm_forward.1}
  #allocation0 [shape = 'u32[]', space=smem, size = 0x4, offset = 0x4, fixed_abs, tag = 'smem constant byte address 0x4 - core index']
  #allocation1 [shape = 'u32[72,128]{1,0:T(1,128)}', space=vmem, size = 0x9000, scoped, tag = 'internal scratch']
  #allocation2 [shape = 'f32[16,290]{1,0:T(8,128)}', space=vmem, size = 0x6000, scoped, tag = 'scratch operand']
  %s0 = inlined_call_operand.vmem [shape: f32[2,8,256], index: 0, kind: input, shape index: {}]
  %s1 = inlined_call_operand.vmem [shape: f32[9,256], index: 1, kind: input, shape index: {}]
  %s2 = inlined_call_operand.vmem [shape: f32[9,256], index: 2, kind: input, shape index: {}]
  %s3 = inlined_call_operand.vmem [shape: f32[16,8], index: 3, kind: input, shape index: {}]
  %s4 = inlined_call_operand.vmem [shape: f32[16,1], index: 4, kind: input, shape index: {}]
  %s5 = inlined_call_operand.vmem [shape: f32[16,8], index: 5, kind: input, shape index: {}]
  %s6 = inlined_call_operand.vmem [shape: f32[16,1], index: 6, kind: input, shape index: {}]
  %s7 = inlined_call_operand.vmem [shape: f32[16,16], index: 7, kind: input, shape index: {}]
  %s8 = inlined_call_operand.vmem [shape: f32[16,1], index: 8, kind: input, shape index: {}]
  %s9 = inlined_call_operand.vmem [shape: f32[2,16,256], index: 9, kind: output, shape index: {}]
  %s10 = sld [smem:[#allocation0]]
  $region69: #{dcm_forward.1} parent=0
    _
  %s12 = ssub.s32 1, %s10
  %s13 = scalar_select 0, %s12, %s10
  loop: start=0, step=1, limit=4
  $region2: #{dcm_forward.1} parent=0 // loop_pre_header
    _
  $region3: #{dcm_forward.1} parent=0 // loop_header
    %s15 = sphi 0, %s19
    %p16 = scmp.ge.s32.totalorder %s15, 4
    %s25 = sphi 0, %s27
    %s28 = sphi 0, %s25
    %s29 = sphi 0, %s28
    %s45 = sphi 0, %s29
    %s49 = sphi 0, %s49
    %s51 = sphi 0, %s49
    %s52 = sphi 0, %s51
    %s66 = sphi 0, %s52
    %s70 = sphi 0, %s70
    %s72 = sphi 0, %s70
    %s73 = sphi 0, %s72
    %s87 = sphi 0, %s73
    %s91 = sphi 0, %s91
    %s93 = sphi 0, %s91
    %s94 = sphi 0, %s93
    %s108 = sphi 0, %s94
    %s112 = sphi 0, %s112
    %s114 = sphi 0, %s112
    %s115 = sphi 0, %s114
    %s129 = sphi 0, %s115
    %s133 = sphi 0, %s133
    %s135 = sphi 0, %s133
    %s136 = sphi 0, %s135
    %s150 = sphi 0, %s136
    %s154 = sphi 0, %s154
    %s156 = sphi 0, %s154
    %s157 = sphi 0, %s156
    %s171 = sphi 0, %s157
    %s175 = sphi 0, %s175
    %s177 = sphi 0, %s175
    %s178 = sphi 0, %s177
    %s192 = sphi 0, %s178
    %s196 = sphi 0, %s196
    %s198 = sphi 0, %s196
    %s199 = sphi 0, %s198
    %s213 = sphi 0, %s199
    %s219 = sphi 0, %s221
    %s222 = sphi 0, %s219
    %s223 = sphi 0, %s222
    %s239 = sphi 0, %s223
  $region4: #{dcm_forward.1} parent=0 // loop_header_branch
    %18 = sbr.rel (%p16) target = $region8
  $region5: #{dcm_forward.1} parent=0 // loop_body
    %s20 = ssub.s32 %s15, 1
    %s21 = ssub.s32 %s15, 2
    %s22 = sadd.s32 %s15, 1
    %s23 = ssub.s32 %s15, %s22
    %p24 = scmp.eq.s32.totalorder %s23, 0
    %s26 = sadd.s32 %s25, 1
    %s27 = scalar_select %p24, %s25, %s26
    %p30 = pneg %p24
    %p31 = scmp.eq.s32.totalorder %s15, 1
    %p32 = por %p30, %p31
    %p33 = scmp.ne.s32.totalorder %s25, %s28
    %p34 = scmp.eq.s32.totalorder %s15, 0
    %p35 = por %p33, %p34
    %p36 = scmp.ne.s32.totalorder %s25, %s28
    %p37 = scmp.eq.s32.totalorder %s20, 1
    %p38 = por %p36, %p37
    %p39 = scmp.ne.s32.totalorder %s28, %s29
    %p40 = scmp.eq.s32.totalorder %s20, 0
    %p41 = por %p39, %p40
    %p42 = scmp.ne.s32.totalorder %s28, %s29
    %p43 = scmp.eq.s32.totalorder %s21, 1
    %p44 = por %p42, %p43
    %p46 = scmp.ne.s32.totalorder %s29, %s45
    %p47 = scmp.eq.s32.totalorder %s21, 0
    %p48 = por %p46, %p47
    %s50 = sadd.s32 %s49, 1
    %p53 = scmp.eq.s32.totalorder %s15, 1
    %p54 = scmp.ne.s32.totalorder %s49, %s51
    %p55 = scmp.eq.s32.totalorder %s15, 0
    %p56 = por %p54, %p55
    %p57 = scmp.ne.s32.totalorder %s49, %s51
    %p58 = scmp.eq.s32.totalorder %s20, 1
    %p59 = por %p57, %p58
    %p60 = scmp.ne.s32.totalorder %s51, %s52
    %p61 = scmp.eq.s32.totalorder %s20, 0
    %p62 = por %p60, %p61
    %p63 = scmp.ne.s32.totalorder %s51, %s52
    %p64 = scmp.eq.s32.totalorder %s21, 1
    %p65 = por %p63, %p64
    %p67 = scmp.ne.s32.totalorder %s52, %s66
    %p68 = scmp.eq.s32.totalorder %s21, 0
    %p69 = por %p67, %p68
    %s71 = sadd.s32 %s70, 1
    %p74 = scmp.eq.s32.totalorder %s15, 1
    %p75 = scmp.ne.s32.totalorder %s70, %s72
    %p76 = scmp.eq.s32.totalorder %s15, 0
    %p77 = por %p75, %p76
    %p78 = scmp.ne.s32.totalorder %s70, %s72
    %p79 = scmp.eq.s32.totalorder %s20, 1
    %p80 = por %p78, %p79
    %p81 = scmp.ne.s32.totalorder %s72, %s73
    %p82 = scmp.eq.s32.totalorder %s20, 0
    %p83 = por %p81, %p82
    %p84 = scmp.ne.s32.totalorder %s72, %s73
    %p85 = scmp.eq.s32.totalorder %s21, 1
    %p86 = por %p84, %p85
    %p88 = scmp.ne.s32.totalorder %s73, %s87
    %p89 = scmp.eq.s32.totalorder %s21, 0
    %p90 = por %p88, %p89
    %s92 = sadd.s32 %s91, 1
    %p95 = scmp.eq.s32.totalorder %s15, 1
    %p96 = scmp.ne.s32.totalorder %s91, %s93
    %p97 = scmp.eq.s32.totalorder %s15, 0
    %p98 = por %p96, %p97
    %p99 = scmp.ne.s32.totalorder %s91, %s93
    %p100 = scmp.eq.s32.totalorder %s20, 1
    %p101 = por %p99, %p100
    %p102 = scmp.ne.s32.totalorder %s93, %s94
    %p103 = scmp.eq.s32.totalorder %s20, 0
    %p104 = por %p102, %p103
    %p105 = scmp.ne.s32.totalorder %s93, %s94
    %p106 = scmp.eq.s32.totalorder %s21, 1
    %p107 = por %p105, %p106
    %p109 = scmp.ne.s32.totalorder %s94, %s108
    %p110 = scmp.eq.s32.totalorder %s21, 0
    %p111 = por %p109, %p110
    %s113 = sadd.s32 %s112, 1
    %p116 = scmp.eq.s32.totalorder %s15, 1
    %p117 = scmp.ne.s32.totalorder %s112, %s114
    %p118 = scmp.eq.s32.totalorder %s15, 0
    %p119 = por %p117, %p118
    %p120 = scmp.ne.s32.totalorder %s112, %s114
    %p121 = scmp.eq.s32.totalorder %s20, 1
    %p122 = por %p120, %p121
    %p123 = scmp.ne.s32.totalorder %s114, %s115
    %p124 = scmp.eq.s32.totalorder %s20, 0
    %p125 = por %p123, %p124
    %p126 = scmp.ne.s32.totalorder %s114, %s115
    %p127 = scmp.eq.s32.totalorder %s21, 1
    %p128 = por %p126, %p127
    %p130 = scmp.ne.s32.totalorder %s115, %s129
    %p131 = scmp.eq.s32.totalorder %s21, 0
    %p132 = por %p130, %p131
    %s134 = sadd.s32 %s133, 1
    %p137 = scmp.eq.s32.totalorder %s15, 1
    %p138 = scmp.ne.s32.totalorder %s133, %s135
    %p139 = scmp.eq.s32.totalorder %s15, 0
    %p140 = por %p138, %p139
    %p141 = scmp.ne.s32.totalorder %s133, %s135
    %p142 = scmp.eq.s32.totalorder %s20, 1
    %p143 = por %p141, %p142
    %p144 = scmp.ne.s32.totalorder %s135, %s136
    %p145 = scmp.eq.s32.totalorder %s20, 0
    %p146 = por %p144, %p145
    %p147 = scmp.ne.s32.totalorder %s135, %s136
    %p148 = scmp.eq.s32.totalorder %s21, 1
    %p149 = por %p147, %p148
    %p151 = scmp.ne.s32.totalorder %s136, %s150
    %p152 = scmp.eq.s32.totalorder %s21, 0
    %p153 = por %p151, %p152
    %s155 = sadd.s32 %s154, 1
    %p158 = scmp.eq.s32.totalorder %s15, 1
    %p159 = scmp.ne.s32.totalorder %s154, %s156
    %p160 = scmp.eq.s32.totalorder %s15, 0
    %p161 = por %p159, %p160
    %p162 = scmp.ne.s32.totalorder %s154, %s156
    %p163 = scmp.eq.s32.totalorder %s20, 1
    %p164 = por %p162, %p163
    %p165 = scmp.ne.s32.totalorder %s156, %s157
    %p166 = scmp.eq.s32.totalorder %s20, 0
    %p167 = por %p165, %p166
    %p168 = scmp.ne.s32.totalorder %s156, %s157
    %p169 = scmp.eq.s32.totalorder %s21, 1
    %p170 = por %p168, %p169
    %p172 = scmp.ne.s32.totalorder %s157, %s171
    %p173 = scmp.eq.s32.totalorder %s21, 0
    %p174 = por %p172, %p173
    %s176 = sadd.s32 %s175, 1
    %p179 = scmp.eq.s32.totalorder %s15, 1
    %p180 = scmp.ne.s32.totalorder %s175, %s177
    %p181 = scmp.eq.s32.totalorder %s15, 0
    %p182 = por %p180, %p181
    %p183 = scmp.ne.s32.totalorder %s175, %s177
    %p184 = scmp.eq.s32.totalorder %s20, 1
    %p185 = por %p183, %p184
    %p186 = scmp.ne.s32.totalorder %s177, %s178
    %p187 = scmp.eq.s32.totalorder %s20, 0
    %p188 = por %p186, %p187
    %p189 = scmp.ne.s32.totalorder %s177, %s178
    %p190 = scmp.eq.s32.totalorder %s21, 1
    %p191 = por %p189, %p190
    %p193 = scmp.ne.s32.totalorder %s178, %s192
    %p194 = scmp.eq.s32.totalorder %s21, 0
    %p195 = por %p193, %p194
    %s197 = sadd.s32 %s196, 1
    %p200 = scmp.eq.s32.totalorder %s15, 1
    %p201 = scmp.ne.s32.totalorder %s196, %s198
    %p202 = scmp.eq.s32.totalorder %s15, 0
    %p203 = por %p201, %p202
    %p204 = scmp.ne.s32.totalorder %s196, %s198
    %p205 = scmp.eq.s32.totalorder %s20, 1
    %p206 = por %p204, %p205
    %p207 = scmp.ne.s32.totalorder %s198, %s199
    %p208 = scmp.eq.s32.totalorder %s20, 0
    %p209 = por %p207, %p208
    %p210 = scmp.ne.s32.totalorder %s198, %s199
    %p211 = scmp.eq.s32.totalorder %s21, 1
    %p212 = por %p210, %p211
    %p214 = scmp.ne.s32.totalorder %s199, %s213
    %p215 = scmp.eq.s32.totalorder %s21, 0
    %p216 = por %p214, %p215
    %s217 = ssub.s32 %s15, %s22
    %p218 = scmp.eq.s32.totalorder %s217, 0
    %s220 = sadd.s32 %s219, 1
    %s221 = scalar_select %p218, %s219, %s220
    %p224 = pneg %p218
    %p225 = scmp.eq.s32.totalorder %s15, 1
    %p226 = por %p224, %p225
    %p227 = scmp.ne.s32.totalorder %s219, %s222
    %p228 = scmp.eq.s32.totalorder %s15, 0
    %p229 = por %p227, %p228
    %p230 = scmp.ne.s32.totalorder %s219, %s222
    %p231 = scmp.eq.s32.totalorder %s20, 1
    %p232 = por %p230, %p231
    %p233 = scmp.ne.s32.totalorder %s222, %s223
    %p234 = scmp.eq.s32.totalorder %s20, 0
    %p235 = por %p233, %p234
    %p236 = scmp.ne.s32.totalorder %s222, %s223
    %p237 = scmp.eq.s32.totalorder %s21, 1
    %p238 = por %p236, %p237
    %p240 = scmp.ne.s32.totalorder %s223, %s239
    %p241 = scmp.eq.s32.totalorder %s21, 0
    %p242 = por %p240, %p241
    %p243 = scmp.le.s32.totalorder 1, %s15
    %p244 = scmp.lt.s32.totalorder %s15, 3
    %p245 = pnand %p243, %p244
    %p246 = pneg %p245
    // Predicated region
    $region9: #{dcm_forward.1} parent=5 // pred_check
      _
    $region10: #{dcm_forward.1} parent=5 // pred_check_branch
      %248 = sbr.rel (%p245) target = $region12
    $region11: #{dcm_forward.1} parent=5 // pred_region
      %s249 = ssub.s32 %s15, 1
      // Predicated region
      $region13: #{dcm_forward.1} parent=11 // pred_check
        %p250 = pneg %p62
      $region14: #{dcm_forward.1} parent=11 // pred_check_branch
        %252 = sbr.rel (%p250) target = $region16
      $region15: #{dcm_forward.1} parent=11 // pred_region
        _
      $region16: #{dcm_forward.1} parent=11 // pred_fallthru
        _
      // Predicated region
      $region17: #{dcm_forward.1} parent=11 // pred_check
        %p253 = pneg %p83
      $region18: #{dcm_forward.1} parent=11 // pred_check_branch
        %255 = sbr.rel (%p253) target = $region20
      $region19: #{dcm_forward.1} parent=11 // pred_region
        _
      $region20: #{dcm_forward.1} parent=11 // pred_fallthru
        _
      // Predicated region
      $region21: #{dcm_forward.1} parent=11 // pred_check
        %p256 = pneg %p104
      $region22: #{dcm_forward.1} parent=11 // pred_check_branch
        %258 = sbr.rel (%p256) target = $region24
      $region23: #{dcm_forward.1} parent=11 // pred_region
        _
      $region24: #{dcm_forward.1} parent=11 // pred_fallthru
        _
      // Predicated region
      $region25: #{dcm_forward.1} parent=11 // pred_check
        %p259 = pneg %p125
      $region26: #{dcm_forward.1} parent=11 // pred_check_branch
        %261 = sbr.rel (%p259) target = $region28
      $region27: #{dcm_forward.1} parent=11 // pred_region
        _
      $region28: #{dcm_forward.1} parent=11 // pred_fallthru
        _
      // Predicated region
      $region29: #{dcm_forward.1} parent=11 // pred_check
        %p262 = pneg %p146
      $region30: #{dcm_forward.1} parent=11 // pred_check_branch
        %264 = sbr.rel (%p262) target = $region32
      $region31: #{dcm_forward.1} parent=11 // pred_region
        _
      $region32: #{dcm_forward.1} parent=11 // pred_fallthru
        _
      // Predicated region
      $region33: #{dcm_forward.1} parent=11 // pred_check
        %p265 = pneg %p167
      $region34: #{dcm_forward.1} parent=11 // pred_check_branch
        %267 = sbr.rel (%p265) target = $region36
      $region35: #{dcm_forward.1} parent=11 // pred_region
        _
      $region36: #{dcm_forward.1} parent=11 // pred_fallthru
        _
      // Predicated region
      $region37: #{dcm_forward.1} parent=11 // pred_check
        %p268 = pneg %p188
      $region38: #{dcm_forward.1} parent=11 // pred_check_branch
        %270 = sbr.rel (%p268) target = $region40
      $region39: #{dcm_forward.1} parent=11 // pred_region
        _
      $region40: #{dcm_forward.1} parent=11 // pred_fallthru
        _
      // Predicated region
      $region41: #{dcm_forward.1} parent=11 // pred_check
        %p271 = pneg %p209
      $region42: #{dcm_forward.1} parent=11 // pred_check_branch
        %273 = sbr.rel (%p271) target = $region44
      $region43: #{dcm_forward.1} parent=11 // pred_region
        _
      $region44: #{dcm_forward.1} parent=11 // pred_fallthru
        _
    $region12: #{dcm_forward.1} parent=5 // pred_fallthru
      _
    %p274 = scmp.lt.s32.totalorder %s15, 2
    // Predicated region
    $region45: #{dcm_forward.1} parent=5 // pred_check
      %p275 = pneg %p274
    $region46: #{dcm_forward.1} parent=5 // pred_check_branch
      %277 = sbr.rel (%p275) target = $region48
    $region47: #{dcm_forward.1} parent=5 // pred_region
      // Predicated region
      $region49: #{dcm_forward.1} parent=47 // pred_check
        %p278 = pneg %p35
      $region50: #{dcm_forward.1} parent=47 // pred_check_branch
        %280 = sbr.rel (%p278) target = $region52
      $region51: #{dcm_forward.1} parent=47 // pred_region
        %p281 = scmp.lt.s32.totalorder %s15, 1
        %s282 = scalar_select %p281, %s15, 1
        %s283 = smul.addr %s282, 2
        %s284 = smul.addr %s283, 8
        %s285 = scalar_lea.vmem %s0, %s284
      $region52: #{dcm_forward.1} parent=47 // pred_fallthru
        _
    $region48: #{dcm_forward.1} parent=5 // pred_fallthru
      _
    %p286 = scmp.le.s32.totalorder 1, %s15
    %p287 = scmp.lt.s32.totalorder %s15, 3
    %p288 = pnand %p286, %p287
    %p289 = pneg %p288
    // Predicated region
    $region53: #{dcm_forward.1} parent=5 // pred_check
      _
    $region54: #{dcm_forward.1} parent=5 // pred_check_branch
      %291 = sbr.rel (%p288) target = $region56
    $region55: #{dcm_forward.1} parent=5 // pred_region
      %s292 = ssub.s32 %s15, 1
      %p293 = scmp.lt.s32.totalorder %s20, 1
      %s294 = scalar_select %p293, %s20, 1
      %s295 = smul.addr %s294, 2
      %s296 = smul.addr %s295, 8
      %s297 = scalar_lea.vmem %s0, %s296
      %p298 = pneg %p41
      %p299 = pneg %p38
      %p300 = pneg %p62
      %p301 = pneg %p59
      %p302 = pneg %p83
      %p303 = pneg %p80
      %p304 = pneg %p104
      %p305 = pneg %p101
      %p306 = pneg %p125
      %p307 = pneg %p122
      %p308 = pneg %p146
      %p309 = pneg %p143
      %p310 = pneg %p167
      %p311 = pneg %p164
      %p312 = pneg %p188
      %p313 = pneg %p185
      %p314 = pneg %p209
      %p315 = pneg %p206
      %p316 = pneg %p235
      %p317 = pneg %p232
      %p318 = scmp.lt.s32.totalorder %s20, 1
      %s319 = scalar_select %p318, %s20, 1
      %s320 = smul.addr %s319, 4
      %s321 = smul.addr %s320, 8
      %s322 = scalar_lea.vmem %s9, %s321
      %p323 = scmp.lt.s32.totalorder %s20, 1
      %s324 = scalar_select %p323, %s20, 1
      %s325 = smul.addr %s324, 2
      %s326 = smul.addr %s325, 8
      %s327 = scalar_lea.vmem %s0, %s326
      %p328 = scmp.lt.s32.totalorder %s20, 1
      %s329 = scalar_select %p328, %s20, 1
      %s330 = smul.addr %s329, 4
      %s331 = smul.addr %s330, 8
      %s332 = scalar_lea.vmem %s9, %s331
      %v333 = vld [vmem:[%s327] sm:$0xff]
      %v334 = vld [vmem:[%s327 + $0x8] sm:$0xff]
      %v335 = vld [vmem:[%s3] sm:$0xff]
      %v336 = vld [vmem:[%s3 + $0x8] sm:$0xff]
      %338 = vset.pattern.permute.xlu0 0
      %339 = vperm.xlu0 %338, %v335
      %v340 = vpop.permute.xlu0 %339
      %343 = vset.pattern.permute.xlu0 0
      %344 = vperm.xlu0 %343, %v336
      %v345 = vpop.permute.xlu0 %344
      %v347 = vperm.slane %v333, 0
      %v348 = vperm.slane %v334, 0
      %v349 = vmul.f32 %v340, %v347
      %v350 = vmul.f32 %v340, %v348
      %v351 = vmul.f32 %v345, %v347
      %v352 = vmul.f32 %v345, %v348
      %353 = vset.pattern.permute.xlu0 1
      %354 = vperm.xlu0 %353, %v335
      %v355 = vpop.permute.xlu0 %354
      %357 = vset.pattern.permute.xlu0 1
      %358 = vperm.xlu0 %357, %v336
      %v359 = vpop.permute.xlu0 %358
      %v361 = vperm.slane %v333, 1
      %v362 = vperm.slane %v334, 1
      %v363 = vmul.f32 %v355, %v361
      %v364 = vmul.f32 %v355, %v362
      %v365 = vmul.f32 %v359, %v361
      %v366 = vmul.f32 %v359, %v362
      %v367 = vadd.f32 %v349, %v363
      %v368 = vadd.f32 %v350, %v364
      %v369 = vadd.f32 %v351, %v365
      %v370 = vadd.f32 %v352, %v366
      %371 = vset.pattern.permute.xlu0 2
      %372 = vperm.xlu0 %371, %v335
      %v373 = vpop.permute.xlu0 %372
      %375 = vset.pattern.permute.xlu0 2
      %376 = vperm.xlu0 %375, %v336
      %v377 = vpop.permute.xlu0 %376
      %v379 = vperm.slane %v333, 2
      %v380 = vperm.slane %v334, 2
      %v381 = vmul.f32 %v373, %v379
      %v382 = vmul.f32 %v373, %v380
      %v383 = vmul.f32 %v377, %v379
      %v384 = vmul.f32 %v377, %v380
      %v385 = vadd.f32 %v367, %v381
      %v386 = vadd.f32 %v368, %v382
      %v387 = vadd.f32 %v369, %v383
      %v388 = vadd.f32 %v370, %v384
      %389 = vset.pattern.permute.xlu0 3
      %390 = vperm.xlu0 %389, %v335
      %v391 = vpop.permute.xlu0 %390
      %393 = vset.pattern.permute.xlu0 3
      %394 = vperm.xlu0 %393, %v336
      %v395 = vpop.permute.xlu0 %394
      %v397 = vperm.slane %v333, 3
      %v398 = vperm.slane %v334, 3
      %v399 = vmul.f32 %v391, %v397
      %v400 = vmul.f32 %v391, %v398
      %v401 = vmul.f32 %v395, %v397
      %v402 = vmul.f32 %v395, %v398
      %v403 = vadd.f32 %v385, %v399
      %v404 = vadd.f32 %v386, %v400
      %v405 = vadd.f32 %v387, %v401
      %v406 = vadd.f32 %v388, %v402
      %407 = vset.pattern.permute.xlu0 4
      %408 = vperm.xlu0 %407, %v335
      %v409 = vpop.permute.xlu0 %408
      %411 = vset.pattern.permute.xlu0 4
      %412 = vperm.xlu0 %411, %v336
      %v413 = vpop.permute.xlu0 %412
      %v415 = vperm.slane %v333, 4
      %v416 = vperm.slane %v334, 4
      %v417 = vmul.f32 %v409, %v415
      %v418 = vmul.f32 %v409, %v416
      %v419 = vmul.f32 %v413, %v415
      %v420 = vmul.f32 %v413, %v416
      %v421 = vadd.f32 %v403, %v417
      %v422 = vadd.f32 %v404, %v418
      %v423 = vadd.f32 %v405, %v419
      %v424 = vadd.f32 %v406, %v420
      %425 = vset.pattern.permute.xlu0 5
      %426 = vperm.xlu0 %425, %v335
      %v427 = vpop.permute.xlu0 %426
      %429 = vset.pattern.permute.xlu0 5
      %430 = vperm.xlu0 %429, %v336
      %v431 = vpop.permute.xlu0 %430
      %v433 = vperm.slane %v333, 5
      %v434 = vperm.slane %v334, 5
      %v435 = vmul.f32 %v427, %v433
      %v436 = vmul.f32 %v427, %v434
      %v437 = vmul.f32 %v431, %v433
      %v438 = vmul.f32 %v431, %v434
      %v439 = vadd.f32 %v421, %v435
      %v440 = vadd.f32 %v422, %v436
      %v441 = vadd.f32 %v423, %v437
      %v442 = vadd.f32 %v424, %v438
      %443 = vset.pattern.permute.xlu0 6
      %444 = vperm.xlu0 %443, %v335
      %v445 = vpop.permute.xlu0 %444
      %447 = vset.pattern.permute.xlu0 6
      %448 = vperm.xlu0 %447, %v336
      %v449 = vpop.permute.xlu0 %448
      %v451 = vperm.slane %v333, 6
      %v452 = vperm.slane %v334, 6
      %v453 = vmul.f32 %v445, %v451
      %v454 = vmul.f32 %v445, %v452
      %v455 = vmul.f32 %v449, %v451
      %v456 = vmul.f32 %v449, %v452
      %v457 = vadd.f32 %v439, %v453
      %v458 = vadd.f32 %v440, %v454
      %v459 = vadd.f32 %v441, %v455
      %v460 = vadd.f32 %v442, %v456
      %461 = vset.pattern.permute.xlu0 7
      %462 = vperm.xlu0 %461, %v335
      %v463 = vpop.permute.xlu0 %462
      %465 = vset.pattern.permute.xlu0 7
      %466 = vperm.xlu0 %465, %v336
      %v467 = vpop.permute.xlu0 %466
      %v469 = vperm.slane %v333, 7
      %v470 = vperm.slane %v334, 7
      %v471 = vmul.f32 %v463, %v469
      %v472 = vmul.f32 %v463, %v470
      %v473 = vmul.f32 %v467, %v469
      %v474 = vmul.f32 %v467, %v470
      %v475 = vadd.f32 %v457, %v471
      %v476 = vadd.f32 %v458, %v472
      %v477 = vadd.f32 %v459, %v473
      %v478 = vadd.f32 %v460, %v474
      %v479 = vld [vmem:[%s5] sm:$0xff]
      %v480 = vld [vmem:[%s5 + $0x8] sm:$0xff]
      %482 = vset.pattern.permute.xlu0 0
      %483 = vperm.xlu0 %482, %v479
      %v484 = vpop.permute.xlu0 %483
      %487 = vset.pattern.permute.xlu0 0
      %488 = vperm.xlu0 %487, %v480
      %v489 = vpop.permute.xlu0 %488
      %v491 = vmul.f32 %v484, %v347
      %v492 = vmul.f32 %v484, %v348
      %v493 = vmul.f32 %v489, %v347
      %v494 = vmul.f32 %v489, %v348
      %495 = vset.pattern.permute.xlu0 1
      %496 = vperm.xlu0 %495, %v479
      %v497 = vpop.permute.xlu0 %496
      %499 = vset.pattern.permute.xlu0 1
      %500 = vperm.xlu0 %499, %v480
      %v501 = vpop.permute.xlu0 %500
      %v503 = vmul.f32 %v497, %v361
      %v504 = vmul.f32 %v497, %v362
      %v505 = vmul.f32 %v501, %v361
      %v506 = vmul.f32 %v501, %v362
      %v507 = vadd.f32 %v491, %v503
      %v508 = vadd.f32 %v492, %v504
      %v509 = vadd.f32 %v493, %v505
      %v510 = vadd.f32 %v494, %v506
      %511 = vset.pattern.permute.xlu0 2
      %512 = vperm.xlu0 %511, %v479
      %v513 = vpop.permute.xlu0 %512
      %515 = vset.pattern.permute.xlu0 2
      %516 = vperm.xlu0 %515, %v480
      %v517 = vpop.permute.xlu0 %516
      %v519 = vmul.f32 %v513, %v379
      %v520 = vmul.f32 %v513, %v380
      %v521 = vmul.f32 %v517, %v379
      %v522 = vmul.f32 %v517, %v380
      %v523 = vadd.f32 %v507, %v519
      %v524 = vadd.f32 %v508, %v520
      %v525 = vadd.f32 %v509, %v521
      %v526 = vadd.f32 %v510, %v522
      %527 = vset.pattern.permute.xlu0 3
      %528 = vperm.xlu0 %527, %v479
      %v529 = vpop.permute.xlu0 %528
      %531 = vset.pattern.permute.xlu0 3
      %532 = vperm.xlu0 %531, %v480
      %v533 = vpop.permute.xlu0 %532
      %v535 = vmul.f32 %v529, %v397
      %v536 = vmul.f32 %v529, %v398
      %v537 = vmul.f32 %v533, %v397
      %v538 = vmul.f32 %v533, %v398
      %v539 = vadd.f32 %v523, %v535
      %v540 = vadd.f32 %v524, %v536
      %v541 = vadd.f32 %v525, %v537
      %v542 = vadd.f32 %v526, %v538
      %543 = vset.pattern.permute.xlu0 4
      %544 = vperm.xlu0 %543, %v479
      %v545 = vpop.permute.xlu0 %544
      %547 = vset.pattern.permute.xlu0 4
      %548 = vperm.xlu0 %547, %v480
      %v549 = vpop.permute.xlu0 %548
      %v551 = vmul.f32 %v545, %v415
      %v552 = vmul.f32 %v545, %v416
      %v553 = vmul.f32 %v549, %v415
      %v554 = vmul.f32 %v549, %v416
      %v555 = vadd.f32 %v539, %v551
      %v556 = vadd.f32 %v540, %v552
      %v557 = vadd.f32 %v541, %v553
      %v558 = vadd.f32 %v542, %v554
      %559 = vset.pattern.permute.xlu0 5
      %560 = vperm.xlu0 %559, %v479
      %v561 = vpop.permute.xlu0 %560
      %563 = vset.pattern.permute.xlu0 5
      %564 = vperm.xlu0 %563, %v480
      %v565 = vpop.permute.xlu0 %564
      %v567 = vmul.f32 %v561, %v433
      %v568 = vmul.f32 %v561, %v434
      %v569 = vmul.f32 %v565, %v433
      %v570 = vmul.f32 %v565, %v434
      %v571 = vadd.f32 %v555, %v567
      %v572 = vadd.f32 %v556, %v568
      %v573 = vadd.f32 %v557, %v569
      %v574 = vadd.f32 %v558, %v570
      %575 = vset.pattern.permute.xlu0 6
      %576 = vperm.xlu0 %575, %v479
      %v577 = vpop.permute.xlu0 %576
      %579 = vset.pattern.permute.xlu0 6
      %580 = vperm.xlu0 %579, %v480
      %v581 = vpop.permute.xlu0 %580
      %v583 = vmul.f32 %v577, %v451
      %v584 = vmul.f32 %v577, %v452
      %v585 = vmul.f32 %v581, %v451
      %v586 = vmul.f32 %v581, %v452
      %v587 = vadd.f32 %v571, %v583
      %v588 = vadd.f32 %v572, %v584
      %v589 = vadd.f32 %v573, %v585
      %v590 = vadd.f32 %v574, %v586
      %591 = vset.pattern.permute.xlu0 7
      %592 = vperm.xlu0 %591, %v479
      %v593 = vpop.permute.xlu0 %592
      %595 = vset.pattern.permute.xlu0 7
      %596 = vperm.xlu0 %595, %v480
      %v597 = vpop.permute.xlu0 %596
      %v599 = vmul.f32 %v593, %v469
      %v600 = vmul.f32 %v593, %v470
      %v601 = vmul.f32 %v597, %v469
      %v602 = vmul.f32 %v597, %v470
      %v603 = vadd.f32 %v587, %v599
      %v604 = vadd.f32 %v588, %v600
      %v605 = vadd.f32 %v589, %v601
      %v606 = vadd.f32 %v590, %v602
      %v607 = vld [vmem:[%s6] sm:$0xff]
      %v608 = vld [vmem:[%s6 + $0x8] sm:$0xff]
      %610 = vset.pattern.permute.xlu0 0
      %611 = vperm.xlu0 %610, %v607
      %v612 = vpop.permute.xlu0 %611
      %615 = vset.pattern.permute.xlu0 0
      %616 = vperm.xlu0 %615, %v608
      %v617 = vpop.permute.xlu0 %616
      %v619 = vadd.f32 %v603, %v612
      %v620 = vadd.f32 %v604, %v612
      %v621 = vadd.f32 %v605, %v617
      %v622 = vadd.f32 %v606, %v617
      %v623 = vmax.f32 %v619, 0.0
      %v624 = vmax.f32 %v620, 0.0
      %v625 = vmax.f32 %v621, 0.0
      %v626 = vmax.f32 %v622, 0.0
      %627 = vst [vmem:[#allocation2] sm:$0xff] 0.0
      %628 = vst [vmem:[#allocation2 + $0x8] sm:$0xff] 0.0
      %vm629 = vcmask 277504
      %630 = vst.msk [vmem:[#allocation2 + $0x10] sm:$0xff] %vm629, 0.0
      %631 = vst [vmem:[#allocation2 + $0x18] sm:$0xff] 0.0
      %632 = vst [vmem:[#allocation2 + $0x20] sm:$0xff] 0.0
      %633 = vst.msk [vmem:[#allocation2 + $0x28] sm:$0xff] %vm629, 0.0
      %638 = vrot.lane.b32.xlu0 %v623, 17
      %v639 = vpop.permute.xlu0 %638
      %640 = vrot.lane.b32.xlu0 %v624, 17
      %v641 = vpop.permute.xlu0 %640
      %642 = vrot.lane.b32.xlu0 %v625, 17
      %v643 = vpop.permute.xlu0 %642
      %644 = vrot.lane.b32.xlu0 %v626, 17
      %v645 = vpop.permute.xlu0 %644
      %vm646 = vcmask 138240
      %v647 = vsel %vm646, %v639, %v641
      %v648 = vsel %vm646, %v643, %v645
      %vm655 = vcmask 1047688
      %656 = vst.msk [vmem:[#allocation2] sm:$0xff] %vm655, %v639
      %657 = vst [vmem:[#allocation2 + $0x8] sm:$0xff] %v647
      %658 = vst.msk [vmem:[#allocation2 + $0x10] sm:$0xff] %vm646, %v641
      %659 = vst.msk [vmem:[#allocation2 + $0x18] sm:$0xff] %vm655, %v643
      %660 = vst [vmem:[#allocation2 + $0x20] sm:$0xff] %v648
      %661 = vst.msk [vmem:[#allocation2 + $0x28] sm:$0xff] %vm646, %v645
      %v662 = vld [vmem:[%s4] sm:$0xff]
      %v663 = vld [vmem:[%s4 + $0x8] sm:$0xff]
      %v664 = vld [vmem:[%s1] ss:$8 sm:$0x3]
      %v666 = vperm.slane %v664, 0
      %v667 = vperm.slane %v664, 1
      %v670 = vmul.f32 %v475, %v666
      %v671 = vmul.f32 %v476, %v667
      %v672 = vmul.f32 %v477, %v666
      %v673 = vmul.f32 %v478, %v667
      %v674 = vadd.f32 %v670, %v671
      %675 = vadd.xlane.f32.xlu0 %v674
      %v676 = vpop.xlane.xlu0 %675
      %v677 = vadd.f32 %v672, %v673
      %678 = vadd.xlane.f32.xlu0 %v677
      %v679 = vpop.xlane.xlu0 %678
      %v680 = vadd.f32 %v662, %v676
      %v681 = vadd.f32 %v663, %v679
      %v682 = vld [vmem:[#allocation2] sm:$0xff]
      %v683 = vld [vmem:[#allocation2 + $0x8] sm:$0xff]
      %v684 = vld [vmem:[#allocation2 + $0x18] sm:$0xff]
      %v685 = vld [vmem:[#allocation2 + $0x20] sm:$0xff]
      %v686 = vld [vmem:[%s2] ss:$8 sm:$0x3]
      %v688 = vperm.slane %v686, 0
      %v689 = vperm.slane %v686, 1
      %v692 = vmul.f32 %v682, %v688
      %v693 = vmul.f32 %v683, %v689
      %v694 = vmul.f32 %v684, %v688
      %v695 = vmul.f32 %v685, %v689
      %697 = vset.pattern.permute.xlu0 0
      %698 = vperm.xlu0 %697, %v680
      %v699 = vpop.permute.xlu0 %698
      %702 = vset.pattern.permute.xlu0 0
      %703 = vperm.xlu0 %702, %v681
      %v704 = vpop.permute.xlu0 %703
      %v706 = vmul.f32 %v699, %v692
      %v707 = vmul.f32 %v699, %v693
      %v708 = vmul.f32 %v704, %v694
      %v709 = vmul.f32 %v704, %v695
      %v710 = vadd.f32 %v706, 0.0
      %v711 = vadd.f32 %v707, 0.0
      %v712 = vadd.f32 %v708, 0.0
      %v713 = vadd.f32 %v709, 0.0
      %s714 = scalar_lea.vmem %s1, 1
      %v715 = vld [vmem:[%s714] ss:$8 sm:$0x3]
      %v717 = vperm.slane %v715, 0
      %v718 = vperm.slane %v715, 1
      %v721 = vmul.f32 %v475, %v717
      %v722 = vmul.f32 %v476, %v718
      %v723 = vmul.f32 %v477, %v717
      %v724 = vmul.f32 %v478, %v718
      %v725 = vadd.f32 %v721, %v722
      %726 = vadd.xlane.f32.xlu0 %v725
      %v727 = vpop.xlane.xlu0 %726
      %v728 = vadd.f32 %v723, %v724
      %729 = vadd.xlane.f32.xlu0 %v728
      %v730 = vpop.xlane.xlu0 %729
      %v731 = vadd.f32 %v662, %v727
      %v732 = vadd.f32 %v663, %v730
      %v733 = vld [vmem:[#allocation2] sm:$0xff]
      %v734 = vld [vmem:[#allocation2 + $0x8] sm:$0xff]
      %v735 = vld [vmem:[#allocation2 + $0x10] sm:$0xff]
      %v736 = vld [vmem:[#allocation2 + $0x18] sm:$0xff]
      %v737 = vld [vmem:[#allocation2 + $0x20] sm:$0xff]
      %v738 = vld [vmem:[#allocation2 + $0x28] sm:$0xff]
      %s739 = scalar_lea.vmem %s2, 1
      %v740 = vld [vmem:[%s739] ss:$8 sm:$0x3]
      %v742 = vperm.slane %v740, 0
      %v743 = vperm.slane %v740, 1
      %744 = vrot.lane.b32.xlu0 %v742, 1
      %v745 = vpop.permute.xlu0 %744
      %746 = vrot.lane.b32.xlu0 %v743, 1
      %v747 = vpop.permute.xlu0 %746
      %vm748 = vcmask 7168
      %v749 = vsel %vm748, %v745, %v747
      %v753 = vmul.f32 %v733, %v745
      %v754 = vmul.f32 %v734, %v749
      %v755 = vmul.f32 %v735, %v747
      %v756 = vmul.f32 %v736, %v745
      %v757 = vmul.f32 %v737, %v749
      %v758 = vmul.f32 %v738, %v747
      %760 = vset.pattern.permute.xlu0 0
      %761 = vperm.xlu0 %760, %v731
      %v762 = vpop.permute.xlu0 %761
      %765 = vset.pattern.permute.xlu0 0
      %766 = vperm.xlu0 %765, %v732
      %v767 = vpop.permute.xlu0 %766
      %v769 = vmul.f32 %v762, %v753
      %v770 = vmul.f32 %v762, %v754
      %v771 = vmul.f32 %v762, %v755
      %v772 = vmul.f32 %v767, %v756
      %v773 = vmul.f32 %v767, %v757
      %v774 = vmul.f32 %v767, %v758
      %781 = vrot.lane.b32.xlu0 %v769, 127
      %v782 = vpop.permute.xlu0 %781
      %783 = vrot.lane.b32.xlu0 %v770, 127
      %v784 = vpop.permute.xlu0 %783
      %785 = vrot.lane.b32.xlu0 %v771, 127
      %v786 = vpop.permute.xlu0 %785
      %787 = vrot.lane.b32.xlu0 %v772, 127
      %v788 = vpop.permute.xlu0 %787
      %789 = vrot.lane.b32.xlu0 %v773, 127
      %v790 = vpop.permute.xlu0 %789
      %791 = vrot.lane.b32.xlu0 %v774, 127
      %v792 = vpop.permute.xlu0 %791
      %vm793 = vcmask 1039360
      %v794 = vsel %vm793, %v782, %v784
      %v795 = vsel %vm793, %v784, %v786
      %v796 = vsel %vm793, %v788, %v790
      %v797 = vsel %vm793, %v790, %v792
      %v802 = vadd.f32 %v710, %v794
      %v803 = vadd.f32 %v711, %v795
      %v804 = vadd.f32 %v712, %v796
      %v805 = vadd.f32 %v713, %v797
      %s806 = scalar_lea.vmem %s1, 2
      %v807 = vld [vmem:[%s806] ss:$8 sm:$0x3]
      %v809 = vperm.slane %v807, 0
      %v810 = vperm.slane %v807, 1
      %v813 = vmul.f32 %v475, %v809
      %v814 = vmul.f32 %v476, %v810
      %v815 = vmul.f32 %v477, %v809
      %v816 = vmul.f32 %v478, %v810
      %v817 = vadd.f32 %v813, %v814
      %818 = vadd.xlane.f32.xlu0 %v817
      %v819 = vpop.xlane.xlu0 %818
      %v820 = vadd.f32 %v815, %v816
      %821 = vadd.xlane.f32.xlu0 %v820
      %v822 = vpop.xlane.xlu0 %821
      %v823 = vadd.f32 %v662, %v819
      %v824 = vadd.f32 %v663, %v822
      %s825 = scalar_lea.vmem %s2, 2
      %v826 = vld [vmem:[%s825] ss:$8 sm:$0x3]
      %v828 = vperm.slane %v826, 0
      %v829 = vperm.slane %v826, 1
      %830 = vrot.lane.b32.xlu0 %v828, 2
      %v831 = vpop.permute.xlu0 %830
      %832 = vrot.lane.b32.xlu0 %v829, 2
      %v833 = vpop.permute.xlu0 %832
      %vm834 = vcmask 15360
      %v835 = vsel %vm834, %v831, %v833
      %v839 = vmul.f32 %v733, %v831
      %v840 = vmul.f32 %v734, %v835
      %v841 = vmul.f32 %v735, %v833
      %v842 = vmul.f32 %v736, %v831
      %v843 = vmul.f32 %v737, %v835
      %v844 = vmul.f32 %v738, %v833
      %846 = vset.pattern.permute.xlu0 0
      %847 = vperm.xlu0 %846, %v823
      %v848 = vpop.permute.xlu0 %847
      %851 = vset.pattern.permute.xlu0 0
      %852 = vperm.xlu0 %851, %v824
      %v853 = vpop.permute.xlu0 %852
      %v855 = vmul.f32 %v848, %v839
      %v856 = vmul.f32 %v848, %v840
      %v857 = vmul.f32 %v848, %v841
      %v858 = vmul.f32 %v853, %v842
      %v859 = vmul.f32 %v853, %v843
      %v860 = vmul.f32 %v853, %v844
      %867 = vrot.lane.b32.xlu0 %v855, 126
      %v868 = vpop.permute.xlu0 %867
      %869 = vrot.lane.b32.xlu0 %v856, 126
      %v870 = vpop.permute.xlu0 %869
      %871 = vrot.lane.b32.xlu0 %v857, 126
      %v872 = vpop.permute.xlu0 %871
      %873 = vrot.lane.b32.xlu0 %v858, 126
      %v874 = vpop.permute.xlu0 %873
      %875 = vrot.lane.b32.xlu0 %v859, 126
      %v876 = vpop.permute.xlu0 %875
      %877 = vrot.lane.b32.xlu0 %v860, 126
      %v878 = vpop.permute.xlu0 %877
      %vm879 = vcmask 1031168
      %v880 = vsel %vm879, %v868, %v870
      %v881 = vsel %vm879, %v870, %v872
      %v882 = vsel %vm879, %v874, %v876
      %v883 = vsel %vm879, %v876, %v878
      %v888 = vadd.f32 %v802, %v880
      %v889 = vadd.f32 %v803, %v881
      %v890 = vadd.f32 %v804, %v882
      %v891 = vadd.f32 %v805, %v883
      %s892 = scalar_lea.vmem %s1, 3
      %v893 = vld [vmem:[%s892] ss:$8 sm:$0x3]
      %v895 = vperm.slane %v893, 0
      %v896 = vperm.slane %v893, 1
      %v899 = vmul.f32 %v475, %v895
      %v900 = vmul.f32 %v476, %v896
      %v901 = vmul.f32 %v477, %v895
      %v902 = vmul.f32 %v478, %v896
      %v903 = vadd.f32 %v899, %v900
      %904 = vadd.xlane.f32.xlu0 %v903
      %v905 = vpop.xlane.xlu0 %904
      %v906 = vadd.f32 %v901, %v902
      %907 = vadd.xlane.f32.xlu0 %v906
      %v908 = vpop.xlane.xlu0 %907
      %v909 = vadd.f32 %v662, %v905
      %v910 = vadd.f32 %v663, %v908
      %s911 = scalar_lea.vmem %s2, 3
      %v912 = vld [vmem:[%s911] ss:$8 sm:$0x3]
      %v914 = vperm.slane %v912, 0
      %v915 = vperm.slane %v912, 1
      %916 = vrot.lane.b32.xlu0 %v914, 16
      %v917 = vpop.permute.xlu0 %916
      %918 = vrot.lane.b32.xlu0 %v915, 16
      %v919 = vpop.permute.xlu0 %918
      %vm920 = vcmask 130048
      %v921 = vsel %vm920, %v917, %v919
      %v925 = vmul.f32 %v733, %v917
      %v926 = vmul.f32 %v734, %v921
      %v927 = vmul.f32 %v735, %v919
      %v928 = vmul.f32 %v736, %v917
      %v929 = vmul.f32 %v737, %v921
      %v930 = vmul.f32 %v738, %v919
      %932 = vset.pattern.permute.xlu0 0
      %933 = vperm.xlu0 %932, %v909
      %v934 = vpop.permute.xlu0 %933
      %937 = vset.pattern.permute.xlu0 0
      %938 = vperm.xlu0 %937, %v910
      %v939 = vpop.permute.xlu0 %938
      %v941 = vmul.f32 %v934, %v925
      %v942 = vmul.f32 %v934, %v926
      %v943 = vmul.f32 %v934, %v927
      %v944 = vmul.f32 %v939, %v928
      %v945 = vmul.f32 %v939, %v929
      %v946 = vmul.f32 %v939, %v930
      %953 = vrot.lane.b32.xlu0 %v941, 112
      %v954 = vpop.permute.xlu0 %953
      %955 = vrot.lane.b32.xlu0 %v942, 112
      %v956 = vpop.permute.xlu0 %955
      %957 = vrot.lane.b32.xlu0 %v943, 112
      %v958 = vpop.permute.xlu0 %957
      %959 = vrot.lane.b32.xlu0 %v944, 112
      %v960 = vpop.permute.xlu0 %959
      %961 = vrot.lane.b32.xlu0 %v945, 112
      %v962 = vpop.permute.xlu0 %961
      %963 = vrot.lane.b32.xlu0 %v946, 112
      %v964 = vpop.permute.xlu0 %963
      %vm965 = vcmask 916480
      %v966 = vsel %vm965, %v954, %v956
      %v967 = vsel %vm965, %v956, %v958
      %v968 = vsel %vm965, %v960, %v962
      %v969 = vsel %vm965, %v962, %v964
      %v974 = vadd.f32 %v888, %v966
      %v975 = vadd.f32 %v889, %v967
      %v976 = vadd.f32 %v890, %v968
      %v977 = vadd.f32 %v891, %v969
      %s978 = scalar_lea.vmem %s1, 4
      %v979 = vld [vmem:[%s978] ss:$8 sm:$0x3]
      %v981 = vperm.slane %v979, 0
      %v982 = vperm.slane %v979, 1
      %v985 = vmul.f32 %v475, %v981
      %v986 = vmul.f32 %v476, %v982
      %v987 = vmul.f32 %v477, %v981
      %v988 = vmul.f32 %v478, %v982
      %v989 = vadd.f32 %v985, %v986
      %990 = vadd.xlane.f32.xlu0 %v989
      %v991 = vpop.xlane.xlu0 %990
      %v992 = vadd.f32 %v987, %v988
      %993 = vadd.xlane.f32.xlu0 %v992
      %v994 = vpop.xlane.xlu0 %993
      %v995 = vadd.f32 %v662, %v991
      %v996 = vadd.f32 %v663, %v994
      %s997 = scalar_lea.vmem %s2, 4
      %v998 = vld [vmem:[%s997] ss:$8 sm:$0x3]
      %v1000 = vperm.slane %v998, 0
      %v1001 = vperm.slane %v998, 1
      %1002 = vrot.lane.b32.xlu0 %v1000, 17
      %v1003 = vpop.permute.xlu0 %1002
      %1004 = vrot.lane.b32.xlu0 %v1001, 17
      %v1005 = vpop.permute.xlu0 %1004
      %v1006 = vsel %vm646, %v1003, %v1005
      %v1010 = vmul.f32 %v733, %v1003
      %v1011 = vmul.f32 %v734, %v1006
      %v1012 = vmul.f32 %v735, %v1005
      %v1013 = vmul.f32 %v736, %v1003
      %v1014 = vmul.f32 %v737, %v1006
      %v1015 = vmul.f32 %v738, %v1005
      %1017 = vset.pattern.permute.xlu0 0
      %1018 = vperm.xlu0 %1017, %v995
      %v1019 = vpop.permute.xlu0 %1018
      %1022 = vset.pattern.permute.xlu0 0
      %1023 = vperm.xlu0 %1022, %v996
      %v1024 = vpop.permute.xlu0 %1023
      %v1026 = vmul.f32 %v1019, %v1010
      %v1027 = vmul.f32 %v1019, %v1011
      %v1028 = vmul.f32 %v1019, %v1012
      %v1029 = vmul.f32 %v1024, %v1013
      %v1030 = vmul.f32 %v1024, %v1014
      %v1031 = vmul.f32 %v1024, %v1015
      %1038 = vrot.lane.b32.xlu0 %v1026, 111
      %v1039 = vpop.permute.xlu0 %1038
      %1040 = vrot.lane.b32.xlu0 %v1027, 111
      %v1041 = vpop.permute.xlu0 %1040
      %1042 = vrot.lane.b32.xlu0 %v1028, 111
      %v1043 = vpop.permute.xlu0 %1042
      %1044 = vrot.lane.b32.xlu0 %v1029, 111
      %v1045 = vpop.permute.xlu0 %1044
      %1046 = vrot.lane.b32.xlu0 %v1030, 111
      %v1047 = vpop.permute.xlu0 %1046
      %1048 = vrot.lane.b32.xlu0 %v1031, 111
      %v1049 = vpop.permute.xlu0 %1048
      %vm1050 = vcmask 908288
      %v1051 = vsel %vm1050, %v1039, %v1041
      %v1052 = vsel %vm1050, %v1041, %v1043
      %v1053 = vsel %vm1050, %v1045, %v1047
      %v1054 = vsel %vm1050, %v1047, %v1049
      %v1059 = vadd.f32 %v974, %v1051
      %v1060 = vadd.f32 %v975, %v1052
      %v1061 = vadd.f32 %v976, %v1053
      %v1062 = vadd.f32 %v977, %v1054
      %s1063 = scalar_lea.vmem %s1, 5
      %v1064 = vld [vmem:[%s1063] ss:$8 sm:$0x3]
      %v1066 = vperm.slane %v1064, 0
      %v1067 = vperm.slane %v1064, 1
      %v1070 = vmul.f32 %v475, %v1066
      %v1071 = vmul.f32 %v476, %v1067
      %v1072 = vmul.f32 %v477, %v1066
      %v1073 = vmul.f32 %v478, %v1067
      %v1074 = vadd.f32 %v1070, %v1071
      %1075 = vadd.xlane.f32.xlu0 %v1074
      %v1076 = vpop.xlane.xlu0 %1075
      %v1077 = vadd.f32 %v1072, %v1073
      %1078 = vadd.xlane.f32.xlu0 %v1077
      %v1079 = vpop.xlane.xlu0 %1078
      %v1080 = vadd.f32 %v662, %v1076
      %v1081 = vadd.f32 %v663, %v1079
      %s1082 = scalar_lea.vmem %s2, 5
      %v1083 = vld [vmem:[%s1082] ss:$8 sm:$0x3]
      %v1085 = vperm.slane %v1083, 0
      %v1086 = vperm.slane %v1083, 1
      %1087 = vrot.lane.b32.xlu0 %v1085, 18
      %v1088 = vpop.permute.xlu0 %1087
      %1089 = vrot.lane.b32.xlu0 %v1086, 18
      %v1090 = vpop.permute.xlu0 %1089
      %vm1091 = vcmask 146432
      %v1092 = vsel %vm1091, %v1088, %v1090
      %v1096 = vmul.f32 %v733, %v1088
      %v1097 = vmul.f32 %v734, %v1092
      %v1098 = vmul.f32 %v735, %v1090
      %v1099 = vmul.f32 %v736, %v1088
      %v1100 = vmul.f32 %v737, %v1092
      %v1101 = vmul.f32 %v738, %v1090
      %1103 = vset.pattern.permute.xlu0 0
      %1104 = vperm.xlu0 %1103, %v1080
      %v1105 = vpop.permute.xlu0 %1104
      %1108 = vset.pattern.permute.xlu0 0
      %1109 = vperm.xlu0 %1108, %v1081
      %v1110 = vpop.permute.xlu0 %1109
      %v1112 = vmul.f32 %v1105, %v1096
      %v1113 = vmul.f32 %v1105, %v1097
      %v1114 = vmul.f32 %v1105, %v1098
      %v1115 = vmul.f32 %v1110, %v1099
      %v1116 = vmul.f32 %v1110, %v1100
      %v1117 = vmul.f32 %v1110, %v1101
      %1124 = vrot.lane.b32.xlu0 %v1112, 110
      %v1125 = vpop.permute.xlu0 %1124
      %1126 = vrot.lane.b32.xlu0 %v1113, 110
      %v1127 = vpop.permute.xlu0 %1126
      %1128 = vrot.lane.b32.xlu0 %v1114, 110
      %v1129 = vpop.permute.xlu0 %1128
      %1130 = vrot.lane.b32.xlu0 %v1115, 110
      %v1131 = vpop.permute.xlu0 %1130
      %1132 = vrot.lane.b32.xlu0 %v1116, 110
      %v1133 = vpop.permute.xlu0 %1132
      %1134 = vrot.lane.b32.xlu0 %v1117, 110
      %v1135 = vpop.permute.xlu0 %1134
      %vm1136 = vcmask 900096
      %v1137 = vsel %vm1136, %v1125, %v1127
      %v1138 = vsel %vm1136, %v1127, %v1129
      %v1139 = vsel %vm1136, %v1131, %v1133
      %v1140 = vsel %vm1136, %v1133, %v1135
      %v1145 = vadd.f32 %v1059, %v1137
      %v1146 = vadd.f32 %v1060, %v1138
      %v1147 = vadd.f32 %v1061, %v1139
      %v1148 = vadd.f32 %v1062, %v1140
      %s1149 = scalar_lea.vmem %s1, 6
      %v1150 = vld [vmem:[%s1149] ss:$8 sm:$0x3]
      %v1152 = vperm.slane %v1150, 0
      %v1153 = vperm.slane %v1150, 1
      %v1156 = vmul.f32 %v475, %v1152
      %v1157 = vmul.f32 %v476, %v1153
      %v1158 = vmul.f32 %v477, %v1152
      %v1159 = vmul.f32 %v478, %v1153
      %v1160 = vadd.f32 %v1156, %v1157
      %1161 = vadd.xlane.f32.xlu0 %v1160
      %v1162 = vpop.xlane.xlu0 %1161
      %v1163 = vadd.f32 %v1158, %v1159
      %1164 = vadd.xlane.f32.xlu0 %v1163
      %v1165 = vpop.xlane.xlu0 %1164
      %v1166 = vadd.f32 %v662, %v1162
      %v1167 = vadd.f32 %v663, %v1165
      %s1168 = scalar_lea.vmem %s2, 6
      %v1169 = vld [vmem:[%s1168] ss:$8 sm:$0x3]
      %v1171 = vperm.slane %v1169, 0
      %v1172 = vperm.slane %v1169, 1
      %1173 = vrot.lane.b32.xlu0 %v1171, 32
      %v1174 = vpop.permute.xlu0 %1173
      %1175 = vrot.lane.b32.xlu0 %v1172, 32
      %v1176 = vpop.permute.xlu0 %1175
      %vm1177 = vcmask 261120
      %v1178 = vsel %vm1177, %v1174, %v1176
      %v1182 = vmul.f32 %v733, %v1174
      %v1183 = vmul.f32 %v734, %v1178
      %v1184 = vmul.f32 %v735, %v1176
      %v1185 = vmul.f32 %v736, %v1174
      %v1186 = vmul.f32 %v737, %v1178
      %v1187 = vmul.f32 %v738, %v1176
      %1189 = vset.pattern.permute.xlu0 0
      %1190 = vperm.xlu0 %1189, %v1166
      %v1191 = vpop.permute.xlu0 %1190
      %1194 = vset.pattern.permute.xlu0 0
      %1195 = vperm.xlu0 %1194, %v1167
      %v1196 = vpop.permute.xlu0 %1195
      %v1198 = vmul.f32 %v1191, %v1182
      %v1199 = vmul.f32 %v1191, %v1183
      %v1200 = vmul.f32 %v1191, %v1184
      %v1201 = vmul.f32 %v1196, %v1185
      %v1202 = vmul.f32 %v1196, %v1186
      %v1203 = vmul.f32 %v1196, %v1187
      %1210 = vrot.lane.b32.xlu0 %v1198, 96
      %v1211 = vpop.permute.xlu0 %1210
      %1212 = vrot.lane.b32.xlu0 %v1199, 96
      %v1213 = vpop.permute.xlu0 %1212
      %1214 = vrot.lane.b32.xlu0 %v1200, 96
      %v1215 = vpop.permute.xlu0 %1214
      %1216 = vrot.lane.b32.xlu0 %v1201, 96
      %v1217 = vpop.permute.xlu0 %1216
      %1218 = vrot.lane.b32.xlu0 %v1202, 96
      %v1219 = vpop.permute.xlu0 %1218
      %1220 = vrot.lane.b32.xlu0 %v1203, 96
      %v1221 = vpop.permute.xlu0 %1220
      %vm1222 = vcmask 785408
      %v1223 = vsel %vm1222, %v1211, %v1213
      %v1224 = vsel %vm1222, %v1213, %v1215
      %v1225 = vsel %vm1222, %v1217, %v1219
      %v1226 = vsel %vm1222, %v1219, %v1221
      %v1231 = vadd.f32 %v1145, %v1223
      %v1232 = vadd.f32 %v1146, %v1224
      %v1233 = vadd.f32 %v1147, %v1225
      %v1234 = vadd.f32 %v1148, %v1226
      %s1235 = scalar_lea.vmem %s1, 7
      %v1236 = vld [vmem:[%s1235] ss:$8 sm:$0x3]
      %v1238 = vperm.slane %v1236, 0
      %v1239 = vperm.slane %v1236, 1
      %v1242 = vmul.f32 %v475, %v1238
      %v1243 = vmul.f32 %v476, %v1239
      %v1244 = vmul.f32 %v477, %v1238
      %v1245 = vmul.f32 %v478, %v1239
      %v1246 = vadd.f32 %v1242, %v1243
      %1247 = vadd.xlane.f32.xlu0 %v1246
      %v1248 = vpop.xlane.xlu0 %1247
      %v1249 = vadd.f32 %v1244, %v1245
      %1250 = vadd.xlane.f32.xlu0 %v1249
      %v1251 = vpop.xlane.xlu0 %1250
      %v1252 = vadd.f32 %v662, %v1248
      %v1253 = vadd.f32 %v663, %v1251
      %s1254 = scalar_lea.vmem %s2, 7
      %v1255 = vld [vmem:[%s1254] ss:$8 sm:$0x3]
      %v1257 = vperm.slane %v1255, 0
      %v1258 = vperm.slane %v1255, 1
      %1259 = vrot.lane.b32.xlu0 %v1257, 33
      %v1260 = vpop.permute.xlu0 %1259
      %1261 = vrot.lane.b32.xlu0 %v1258, 33
      %v1262 = vpop.permute.xlu0 %1261
      %vm1263 = vcmask 269312
      %v1264 = vsel %vm1263, %v1260, %v1262
      %v1268 = vmul.f32 %v733, %v1260
      %v1269 = vmul.f32 %v734, %v1264
      %v1270 = vmul.f32 %v735, %v1262
      %v1271 = vmul.f32 %v736, %v1260
      %v1272 = vmul.f32 %v737, %v1264
      %v1273 = vmul.f32 %v738, %v1262
      %1275 = vset.pattern.permute.xlu0 0
      %1276 = vperm.xlu0 %1275, %v1252
      %v1277 = vpop.permute.xlu0 %1276
      %1280 = vset.pattern.permute.xlu0 0
      %1281 = vperm.xlu0 %1280, %v1253
      %v1282 = vpop.permute.xlu0 %1281
      %v1284 = vmul.f32 %v1277, %v1268
      %v1285 = vmul.f32 %v1277, %v1269
      %v1286 = vmul.f32 %v1277, %v1270
      %v1287 = vmul.f32 %v1282, %v1271
      %v1288 = vmul.f32 %v1282, %v1272
      %v1289 = vmul.f32 %v1282, %v1273
      %1296 = vrot.lane.b32.xlu0 %v1284, 95
      %v1297 = vpop.permute.xlu0 %1296
      %1298 = vrot.lane.b32.xlu0 %v1285, 95
      %v1299 = vpop.permute.xlu0 %1298
      %1300 = vrot.lane.b32.xlu0 %v1286, 95
      %v1301 = vpop.permute.xlu0 %1300
      %1302 = vrot.lane.b32.xlu0 %v1287, 95
      %v1303 = vpop.permute.xlu0 %1302
      %1304 = vrot.lane.b32.xlu0 %v1288, 95
      %v1305 = vpop.permute.xlu0 %1304
      %1306 = vrot.lane.b32.xlu0 %v1289, 95
      %v1307 = vpop.permute.xlu0 %1306
      %vm1308 = vcmask 777216
      %v1309 = vsel %vm1308, %v1297, %v1299
      %v1310 = vsel %vm1308, %v1299, %v1301
      %v1311 = vsel %vm1308, %v1303, %v1305
      %v1312 = vsel %vm1308, %v1305, %v1307
      %v1317 = vadd.f32 %v1231, %v1309
      %v1318 = vadd.f32 %v1232, %v1310
      %v1319 = vadd.f32 %v1233, %v1311
      %v1320 = vadd.f32 %v1234, %v1312
      %s1321 = scalar_lea.vmem %s1, 16
      %v1322 = vld [vmem:[%s1321] ss:$8 sm:$0x3]
      %v1324 = vperm.slane %v1322, 0
      %v1325 = vperm.slane %v1322, 1
      %v1328 = vmul.f32 %v475, %v1324
      %v1329 = vmul.f32 %v476, %v1325
      %v1330 = vmul.f32 %v477, %v1324
      %v1331 = vmul.f32 %v478, %v1325
      %v1332 = vadd.f32 %v1328, %v1329
      %1333 = vadd.xlane.f32.xlu0 %v1332
      %v1334 = vpop.xlane.xlu0 %1333
      %v1335 = vadd.f32 %v1330, %v1331
      %1336 = vadd.xlane.f32.xlu0 %v1335
      %v1337 = vpop.xlane.xlu0 %1336
      %v1338 = vadd.f32 %v662, %v1334
      %v1339 = vadd.f32 %v663, %v1337
      %s1340 = scalar_lea.vmem %s2, 16
      %v1341 = vld [vmem:[%s1340] ss:$8 sm:$0x3]
      %v1343 = vperm.slane %v1341, 0
      %v1344 = vperm.slane %v1341, 1
      %1345 = vrot.lane.b32.xlu0 %v1343, 34
      %v1346 = vpop.permute.xlu0 %1345
      %1347 = vrot.lane.b32.xlu0 %v1344, 34
      %v1348 = vpop.permute.xlu0 %1347
      %v1349 = vsel %vm629, %v1346, %v1348
      %v1353 = vmul.f32 %v733, %v1346
      %v1354 = vmul.f32 %v734, %v1349
      %v1355 = vmul.f32 %v735, %v1348
      %v1356 = vmul.f32 %v736, %v1346
      %v1357 = vmul.f32 %v737, %v1349
      %v1358 = vmul.f32 %v738, %v1348
      %1360 = vset.pattern.permute.xlu0 0
      %1361 = vperm.xlu0 %1360, %v1338
      %v1362 = vpop.permute.xlu0 %1361
      %1365 = vset.pattern.permute.xlu0 0
      %1366 = vperm.xlu0 %1365, %v1339
      %v1367 = vpop.permute.xlu0 %1366
      %v1369 = vmul.f32 %v1362, %v1353
      %v1370 = vmul.f32 %v1362, %v1354
      %v1371 = vmul.f32 %v1362, %v1355
      %v1372 = vmul.f32 %v1367, %v1356
      %v1373 = vmul.f32 %v1367, %v1357
      %v1374 = vmul.f32 %v1367, %v1358
      %1381 = vrot.lane.b32.xlu0 %v1369, 94
      %v1382 = vpop.permute.xlu0 %1381
      %1383 = vrot.lane.b32.xlu0 %v1370, 94
      %v1384 = vpop.permute.xlu0 %1383
      %1385 = vrot.lane.b32.xlu0 %v1371, 94
      %v1386 = vpop.permute.xlu0 %1385
      %1387 = vrot.lane.b32.xlu0 %v1372, 94
      %v1388 = vpop.permute.xlu0 %1387
      %1389 = vrot.lane.b32.xlu0 %v1373, 94
      %v1390 = vpop.permute.xlu0 %1389
      %1391 = vrot.lane.b32.xlu0 %v1374, 94
      %v1392 = vpop.permute.xlu0 %1391
      %vm1393 = vcmask 769024
      %v1394 = vsel %vm1393, %v1382, %v1384
      %v1395 = vsel %vm1393, %v1384, %v1386
      %v1396 = vsel %vm1393, %v1388, %v1390
      %v1397 = vsel %vm1393, %v1390, %v1392
      %v1402 = vadd.f32 %v1317, %v1394
      %v1403 = vadd.f32 %v1318, %v1395
      %v1404 = vadd.f32 %v1319, %v1396
      %v1405 = vadd.f32 %v1320, %v1397
      %v1406 = vmax.f32 %v1402, 0.0
      %v1407 = vmax.f32 %v1403, 0.0
      %v1408 = vmax.f32 %v1404, 0.0
      %v1409 = vmax.f32 %v1405, 0.0
      %v1410 = vld [vmem:[%s7] sm:$0xff]
      %v1411 = vld [vmem:[%s7 + $0x8] sm:$0xff]
      %1413 = vset.pattern.permute.xlu0 0
      %1414 = vperm.xlu0 %1413, %v1410
      %v1415 = vpop.permute.xlu0 %1414
      %1418 = vset.pattern.permute.xlu0 0
      %1419 = vperm.xlu0 %1418, %v1411
      %v1420 = vpop.permute.xlu0 %1419
      %v1422 = vperm.slane %v1406, 0
      %v1423 = vperm.slane %v1407, 0
      %v1424 = vmul.f32 %v1415, %v1422
      %v1425 = vmul.f32 %v1415, %v1423
      %v1426 = vmul.f32 %v1420, %v1422
      %v1427 = vmul.f32 %v1420, %v1423
      %1428 = vset.pattern.permute.xlu0 1
      %1429 = vperm.xlu0 %1428, %v1410
      %v1430 = vpop.permute.xlu0 %1429
      %1432 = vset.pattern.permute.xlu0 1
      %1433 = vperm.xlu0 %1432, %v1411
      %v1434 = vpop.permute.xlu0 %1433
      %v1436 = vperm.slane %v1406, 1
      %v1437 = vperm.slane %v1407, 1
      %v1438 = vmul.f32 %v1430, %v1436
      %v1439 = vmul.f32 %v1430, %v1437
      %v1440 = vmul.f32 %v1434, %v1436
      %v1441 = vmul.f32 %v1434, %v1437
      %v1442 = vadd.f32 %v1424, %v1438
      %v1443 = vadd.f32 %v1425, %v1439
      %v1444 = vadd.f32 %v1426, %v1440
      %v1445 = vadd.f32 %v1427, %v1441
      %1446 = vset.pattern.permute.xlu0 2
      %1447 = vperm.xlu0 %1446, %v1410
      %v1448 = vpop.permute.xlu0 %1447
      %1450 = vset.pattern.permute.xlu0 2
      %1451 = vperm.xlu0 %1450, %v1411
      %v1452 = vpop.permute.xlu0 %1451
      %v1454 = vperm.slane %v1406, 2
      %v1455 = vperm.slane %v1407, 2
      %v1456 = vmul.f32 %v1448, %v1454
      %v1457 = vmul.f32 %v1448, %v1455
      %v1458 = vmul.f32 %v1452, %v1454
      %v1459 = vmul.f32 %v1452, %v1455
      %v1460 = vadd.f32 %v1442, %v1456
      %v1461 = vadd.f32 %v1443, %v1457
      %v1462 = vadd.f32 %v1444, %v1458
      %v1463 = vadd.f32 %v1445, %v1459
      %1464 = vset.pattern.permute.xlu0 3
      %1465 = vperm.xlu0 %1464, %v1410
      %v1466 = vpop.permute.xlu0 %1465
      %1468 = vset.pattern.permute.xlu0 3
      %1469 = vperm.xlu0 %1468, %v1411
      %v1470 = vpop.permute.xlu0 %1469
      %v1472 = vperm.slane %v1406, 3
      %v1473 = vperm.slane %v1407, 3
      %v1474 = vmul.f32 %v1466, %v1472
      %v1475 = vmul.f32 %v1466, %v1473
      %v1476 = vmul.f32 %v1470, %v1472
      %v1477 = vmul.f32 %v1470, %v1473
      %v1478 = vadd.f32 %v1460, %v1474
      %v1479 = vadd.f32 %v1461, %v1475
      %v1480 = vadd.f32 %v1462, %v1476
      %v1481 = vadd.f32 %v1463, %v1477
      %1482 = vset.pattern.permute.xlu0 4
      %1483 = vperm.xlu0 %1482, %v1410
      %v1484 = vpop.permute.xlu0 %1483
      %1486 = vset.pattern.permute.xlu0 4
      %1487 = vperm.xlu0 %1486, %v1411
      %v1488 = vpop.permute.xlu0 %1487
      %v1490 = vperm.slane %v1406, 4
      %v1491 = vperm.slane %v1407, 4
      %v1492 = vmul.f32 %v1484, %v1490
      %v1493 = vmul.f32 %v1484, %v1491
      %v1494 = vmul.f32 %v1488, %v1490
      %v1495 = vmul.f32 %v1488, %v1491
      %v1496 = vadd.f32 %v1478, %v1492
      %v1497 = vadd.f32 %v1479, %v1493
      %v1498 = vadd.f32 %v1480, %v1494
      %v1499 = vadd.f32 %v1481, %v1495
      %1500 = vset.pattern.permute.xlu0 5
      %1501 = vperm.xlu0 %1500, %v1410
      %v1502 = vpop.permute.xlu0 %1501
      %1504 = vset.pattern.permute.xlu0 5
      %1505 = vperm.xlu0 %1504, %v1411
      %v1506 = vpop.permute.xlu0 %1505
      %v1508 = vperm.slane %v1406, 5
      %v1509 = vperm.slane %v1407, 5
      %v1510 = vmul.f32 %v1502, %v1508
      %v1511 = vmul.f32 %v1502, %v1509
      %v1512 = vmul.f32 %v1506, %v1508
      %v1513 = vmul.f32 %v1506, %v1509
      %v1514 = vadd.f32 %v1496, %v1510
      %v1515 = vadd.f32 %v1497, %v1511
      %v1516 = vadd.f32 %v1498, %v1512
      %v1517 = vadd.f32 %v1499, %v1513
      %1518 = vset.pattern.permute.xlu0 6
      %1519 = vperm.xlu0 %1518, %v1410
      %v1520 = vpop.permute.xlu0 %1519
      %1522 = vset.pattern.permute.xlu0 6
      %1523 = vperm.xlu0 %1522, %v1411
      %v1524 = vpop.permute.xlu0 %1523
      %v1526 = vperm.slane %v1406, 6
      %v1527 = vperm.slane %v1407, 6
      %v1528 = vmul.f32 %v1520, %v1526
      %v1529 = vmul.f32 %v1520, %v1527
      %v1530 = vmul.f32 %v1524, %v1526
      %v1531 = vmul.f32 %v1524, %v1527
      %v1532 = vadd.f32 %v1514, %v1528
      %v1533 = vadd.f32 %v1515, %v1529
      %v1534 = vadd.f32 %v1516, %v1530
      %v1535 = vadd.f32 %v1517, %v1531
      %1536 = vset.pattern.permute.xlu0 7
      %1537 = vperm.xlu0 %1536, %v1410
      %v1538 = vpop.permute.xlu0 %1537
      %1540 = vset.pattern.permute.xlu0 7
      %1541 = vperm.xlu0 %1540, %v1411
      %v1542 = vpop.permute.xlu0 %1541
      %v1544 = vperm.slane %v1406, 7
      %v1545 = vperm.slane %v1407, 7
      %v1546 = vmul.f32 %v1538, %v1544
      %v1547 = vmul.f32 %v1538, %v1545
      %v1548 = vmul.f32 %v1542, %v1544
      %v1549 = vmul.f32 %v1542, %v1545
      %v1550 = vadd.f32 %v1532, %v1546
      %v1551 = vadd.f32 %v1533, %v1547
      %v1552 = vadd.f32 %v1534, %v1548
      %v1553 = vadd.f32 %v1535, %v1549
      %1554 = vset.pattern.permute.xlu0 8
      %1555 = vperm.xlu0 %1554, %v1410
      %v1556 = vpop.permute.xlu0 %1555
      %1558 = vset.pattern.permute.xlu0 8
      %1559 = vperm.xlu0 %1558, %v1411
      %v1560 = vpop.permute.xlu0 %1559
      %v1562 = vperm.slane %v1408, 0
      %v1563 = vperm.slane %v1409, 0
      %v1564 = vmul.f32 %v1556, %v1562
      %v1565 = vmul.f32 %v1556, %v1563
      %v1566 = vmul.f32 %v1560, %v1562
      %v1567 = vmul.f32 %v1560, %v1563
      %v1568 = vadd.f32 %v1550, %v1564
      %v1569 = vadd.f32 %v1551, %v1565
      %v1570 = vadd.f32 %v1552, %v1566
      %v1571 = vadd.f32 %v1553, %v1567
      %1572 = vset.pattern.permute.xlu0 9
      %1573 = vperm.xlu0 %1572, %v1410
      %v1574 = vpop.permute.xlu0 %1573
      %1576 = vset.pattern.permute.xlu0 9
      %1577 = vperm.xlu0 %1576, %v1411
      %v1578 = vpop.permute.xlu0 %1577
      %v1580 = vperm.slane %v1408, 1
      %v1581 = vperm.slane %v1409, 1
      %v1582 = vmul.f32 %v1574, %v1580
      %v1583 = vmul.f32 %v1574, %v1581
      %v1584 = vmul.f32 %v1578, %v1580
      %v1585 = vmul.f32 %v1578, %v1581
      %v1586 = vadd.f32 %v1568, %v1582
      %v1587 = vadd.f32 %v1569, %v1583
      %v1588 = vadd.f32 %v1570, %v1584
      %v1589 = vadd.f32 %v1571, %v1585
      %1590 = vset.pattern.permute.xlu0 10
      %1591 = vperm.xlu0 %1590, %v1410
      %v1592 = vpop.permute.xlu0 %1591
      %1594 = vset.pattern.permute.xlu0 10
      %1595 = vperm.xlu0 %1594, %v1411
      %v1596 = vpop.permute.xlu0 %1595
      %v1598 = vperm.slane %v1408, 2
      %v1599 = vperm.slane %v1409, 2
      %v1600 = vmul.f32 %v1592, %v1598
      %v1601 = vmul.f32 %v1592, %v1599
      %v1602 = vmul.f32 %v1596, %v1598
      %v1603 = vmul.f32 %v1596, %v1599
      %v1604 = vadd.f32 %v1586, %v1600
      %v1605 = vadd.f32 %v1587, %v1601
      %v1606 = vadd.f32 %v1588, %v1602
      %v1607 = vadd.f32 %v1589, %v1603
      %1608 = vset.pattern.permute.xlu0 11
      %1609 = vperm.xlu0 %1608, %v1410
      %v1610 = vpop.permute.xlu0 %1609
      %1612 = vset.pattern.permute.xlu0 11
      %1613 = vperm.xlu0 %1612, %v1411
      %v1614 = vpop.permute.xlu0 %1613
      %v1616 = vperm.slane %v1408, 3
      %v1617 = vperm.slane %v1409, 3
      %v1618 = vmul.f32 %v1610, %v1616
      %v1619 = vmul.f32 %v1610, %v1617
      %v1620 = vmul.f32 %v1614, %v1616
      %v1621 = vmul.f32 %v1614, %v1617
      %v1622 = vadd.f32 %v1604, %v1618
      %v1623 = vadd.f32 %v1605, %v1619
      %v1624 = vadd.f32 %v1606, %v1620
      %v1625 = vadd.f32 %v1607, %v1621
      %1626 = vset.pattern.permute.xlu0 12
      %1627 = vperm.xlu0 %1626, %v1410
      %v1628 = vpop.permute.xlu0 %1627
      %1630 = vset.pattern.permute.xlu0 12
      %1631 = vperm.xlu0 %1630, %v1411
      %v1632 = vpop.permute.xlu0 %1631
      %v1634 = vperm.slane %v1408, 4
      %v1635 = vperm.slane %v1409, 4
      %v1636 = vmul.f32 %v1628, %v1634
      %v1637 = vmul.f32 %v1628, %v1635
      %v1638 = vmul.f32 %v1632, %v1634
      %v1639 = vmul.f32 %v1632, %v1635
      %v1640 = vadd.f32 %v1622, %v1636
      %v1641 = vadd.f32 %v1623, %v1637
      %v1642 = vadd.f32 %v1624, %v1638
      %v1643 = vadd.f32 %v1625, %v1639
      %1644 = vset.pattern.permute.xlu0 13
      %1645 = vperm.xlu0 %1644, %v1410
      %v1646 = vpop.permute.xlu0 %1645
      %1648 = vset.pattern.permute.xlu0 13
      %1649 = vperm.xlu0 %1648, %v1411
      %v1650 = vpop.permute.xlu0 %1649
      %v1652 = vperm.slane %v1408, 5
      %v1653 = vperm.slane %v1409, 5
      %v1654 = vmul.f32 %v1646, %v1652
      %v1655 = vmul.f32 %v1646, %v1653
      %v1656 = vmul.f32 %v1650, %v1652
      %v1657 = vmul.f32 %v1650, %v1653
      %v1658 = vadd.f32 %v1640, %v1654
      %v1659 = vadd.f32 %v1641, %v1655
      %v1660 = vadd.f32 %v1642, %v1656
      %v1661 = vadd.f32 %v1643, %v1657
      %1662 = vset.pattern.permute.xlu0 14
      %1663 = vperm.xlu0 %1662, %v1410
      %v1664 = vpop.permute.xlu0 %1663
      %1666 = vset.pattern.permute.xlu0 14
      %1667 = vperm.xlu0 %1666, %v1411
      %v1668 = vpop.permute.xlu0 %1667
      %v1670 = vperm.slane %v1408, 6
      %v1671 = vperm.slane %v1409, 6
      %v1672 = vmul.f32 %v1664, %v1670
      %v1673 = vmul.f32 %v1664, %v1671
      %v1674 = vmul.f32 %v1668, %v1670
      %v1675 = vmul.f32 %v1668, %v1671
      %v1676 = vadd.f32 %v1658, %v1672
      %v1677 = vadd.f32 %v1659, %v1673
      %v1678 = vadd.f32 %v1660, %v1674
      %v1679 = vadd.f32 %v1661, %v1675
      %1680 = vset.pattern.permute.xlu0 15
      %1681 = vperm.xlu0 %1680, %v1410
      %v1682 = vpop.permute.xlu0 %1681
      %1684 = vset.pattern.permute.xlu0 15
      %1685 = vperm.xlu0 %1684, %v1411
      %v1686 = vpop.permute.xlu0 %1685
      %v1688 = vperm.slane %v1408, 7
      %v1689 = vperm.slane %v1409, 7
      %v1690 = vmul.f32 %v1682, %v1688
      %v1691 = vmul.f32 %v1682, %v1689
      %v1692 = vmul.f32 %v1686, %v1688
      %v1693 = vmul.f32 %v1686, %v1689
      %v1694 = vadd.f32 %v1676, %v1690
      %v1695 = vadd.f32 %v1677, %v1691
      %v1696 = vadd.f32 %v1678, %v1692
      %v1697 = vadd.f32 %v1679, %v1693
      %v1698 = vld [vmem:[%s8] sm:$0xff]
      %v1699 = vld [vmem:[%s8 + $0x8] sm:$0xff]
      %1701 = vset.pattern.permute.xlu0 0
      %1702 = vperm.xlu0 %1701, %v1698
      %v1703 = vpop.permute.xlu0 %1702
      %1706 = vset.pattern.permute.xlu0 0
      %1707 = vperm.xlu0 %1706, %v1699
      %v1708 = vpop.permute.xlu0 %1707
      %v1710 = vadd.f32 %v1694, %v1703
      %v1711 = vadd.f32 %v1695, %v1703
      %v1712 = vadd.f32 %v1696, %v1708
      %v1713 = vadd.f32 %v1697, %v1708
      %v1714 = vmax.f32 %v1710, 0.0
      %v1715 = vmax.f32 %v1711, 0.0
      %v1716 = vmax.f32 %v1712, 0.0
      %v1717 = vmax.f32 %v1713, 0.0
      %1718 = vst [vmem:[%s332] sm:$0xff] %v1714
      %1719 = vst [vmem:[%s332 + $0x8] sm:$0xff] %v1715
      %1720 = vst [vmem:[%s332 + $0x10] sm:$0xff] %v1716
      %1721 = vst [vmem:[%s332 + $0x18] sm:$0xff] %v1717
      %p1722 = scmp.lt.s32.totalorder %s20, 1
      %s1723 = scalar_select %p1722, %s20, 1
      %s1724 = smul.addr %s1723, 4
      %s1725 = smul.addr %s1724, 8
      %s1726 = scalar_lea.vmem %s9, %s1725
      // Predicated region
      $region57: #{dcm_forward.1} parent=55 // pred_check
        %p1727 = pneg %p232
      $region58: #{dcm_forward.1} parent=55 // pred_check_branch
        %1729 = sbr.rel (%p1727) target = $region60
      $region59: #{dcm_forward.1} parent=55 // pred_region
        _
      $region60: #{dcm_forward.1} parent=55 // pred_fallthru
        _
    $region56: #{dcm_forward.1} parent=5 // pred_fallthru
      _
    %p1730 = scmp.le.s32.totalorder 2, %s15
    // Predicated region
    $region61: #{dcm_forward.1} parent=5 // pred_check
      %p1731 = pneg %p1730
    $region62: #{dcm_forward.1} parent=5 // pred_check_branch
      %1733 = sbr.rel (%p1731) target = $region64
    $region63: #{dcm_forward.1} parent=5 // pred_region
      %s1734 = ssub.s32 %s15, 2
      // Predicated region
      $region65: #{dcm_forward.1} parent=63 // pred_check
        %p1735 = pneg %p238
      $region66: #{dcm_forward.1} parent=63 // pred_check_branch
        %1737 = sbr.rel (%p1735) target = $region68
      $region67: #{dcm_forward.1} parent=63 // pred_region
        %p1738 = scmp.lt.s32.totalorder %s21, 1
        %s1739 = scalar_select %p1738, %s21, 1
        %s1740 = smul.addr %s1739, 4
        %s1741 = smul.addr %s1740, 8
        %s1742 = scalar_lea.vmem %s9, %s1741
      $region68: #{dcm_forward.1} parent=63 // pred_fallthru
        _
    $region64: #{dcm_forward.1} parent=5 // pred_fallthru
      _
  $region6: #{dcm_forward.1} parent=0 // loop_footer
    %s19 = sadd.s32 1, %s15
  $region7: #{dcm_forward.1} parent=0 // loop_footer_branch
    %14 = sbr.rel target = $region3
  $region8: #{dcm_forward.1} parent=0 // loop_exit
    _

</llo_original>
